<compile_context>
chip_gen: v6e
topology: v6e:2x2x1
jax: 0.10.0
libtpu: 0.0.40
codegen_flags: <defaults>
</compile_context>

<pallas_src>
import math
from functools import partial

import jax
import jax.numpy as jnp
from jax.experimental import pallas as pl
from jax.experimental.pallas import tpu as pltpu


def _cmsa_kernel(xcol_ref, lens_ref, cw_ref, wq_ref, wkv_ref, hsum_ref, hexp_ref,
                 lw_ref, ow_ref, bias_ref, out_ref, *, Bt, L, K, E, H):
    """Bt batch elements per grid step: conv1d+relu (one wide matmul on the
    pre-im2col'd block), masked mean query, single-query multi-head attention
    (fc_o skipped), max-pool, MLP head."""
    KE = K * E
    OUT_PAD = out_ref.shape[-1]

    # ---- packed biases: one 128-lane-aligned row per bias ----
    conv_b = bias_ref[0:1, 0:E]            # [1, E]
    bq     = bias_ref[1:2, 0:E]            # [1, E]   (already scaled by 1/sqrt(Dh))
    bkv    = bias_ref[2:3, 0:2 * E]        # [1, 2E]  (bk | bv)
    lin_b  = bias_ref[3:4, 0:32]           # [1, 32]
    out_b  = bias_ref[4:5, 0:OUT_PAD]      # [1, OUT_PAD]

    # ---- Conv1d "same" + ReLU: ONE wide bf16 matmul, f32 accumulation ----
    xcol = xcol_ref[...].reshape(Bt * L, KE)                              # bf16
    conv = jnp.dot(xcol, cw_ref[...], preferred_element_type=jnp.float32)
    o_conv = jnp.maximum(conv + conv_b, 0.0)                              # [Bt*L, E] f32
    o3 = o_conv.reshape(Bt, L, E)

    # ---- in-kernel prefix mask from sequence lengths (no lane-padded mask DMA) ----
    lens = lens_ref[...]                                                  # [Bt, 1] f32
    lens_i = lens.astype(jnp.int32)
    denom = jnp.maximum(lens, 1.0)                                        # guard zero-length
    valid_e = jax.lax.broadcasted_iota(jnp.int32, (Bt, L, E), 1) < lens_i[:, :, None]
    valid_h = jax.lax.broadcasted_iota(jnp.int32, (Bt, L, H), 1) < lens_i[:, :, None]

    # ---- masked mean pooling -> query (length used directly as denominator) ----
    q = jnp.sum(jnp.where(valid_e, o3, 0.0), axis=1) * pl.reciprocal(denom, approx=True)

    # ---- projections (bf16 operands, f32 accumulation); K|V fused ----
    o_bf = o_conv.astype(jnp.bfloat16)
    Qm = jnp.dot(q.astype(jnp.bfloat16), wq_ref[...],
                 preferred_element_type=jnp.float32) + bq                 # [Bt, E] (pre-scaled)
    KV = jnp.dot(o_bf, wkv_ref[...],
                 preferred_element_type=jnp.float32) + bkv                # [Bt*L, 2E]
    KV3 = KV.reshape(Bt, L, 2 * E)

    # ---- per-head energies via bf16 one-hot head-sum matmul -> [Bt, L, H] ----
    kq = (KV3[:, :, :E] * Qm[:, None, :]).reshape(Bt * L, E)              # f32
    energy = jnp.dot(kq.astype(jnp.bfloat16), hsum_ref[...],
                     preferred_element_type=jnp.float32).reshape(Bt, L, H)
    energy = jnp.where(valid_h, energy, -1e10)                            # masked_fill(mask==0)
    m = jnp.max(energy, axis=1, keepdims=True)
    p = jnp.exp(energy - m)
    attn = p * pl.reciprocal(jnp.sum(p, axis=1, keepdims=True), approx=True)  # softmax over L

    attn_e = jnp.dot(attn.reshape(Bt * L, H).astype(jnp.bfloat16), hexp_ref[...],
                     preferred_element_type=jnp.float32).reshape(Bt, L, E)
    att_out = jnp.sum(attn_e * KV3[:, :, E:], axis=1)                     # [Bt, E]

    # ---- max-pool over the sequence ----
    # TODO(synk): the literal legacy code max-reduces the last dim of the [B,1,E]
    # attention output, which is shape-inconsistent with Linear(2E, 32); we keep
    # the prior interpretation: max-pool the conv features over the sequence.
    o2 = jnp.max(o3, axis=1)                                              # [Bt, E]

    # ---- head MLP: relu(Linear(2E,32)) then Linear(32,out_dim) ----
    # (no concat: lin_w is split on the contraction dim)
    hidden = (jnp.dot(att_out.astype(jnp.bfloat16), lw_ref[0:E, :],
                      preferred_element_type=jnp.float32)
              + jnp.dot(o2.astype(jnp.bfloat16), lw_ref[E:2 * E, :],
                        preferred_element_type=jnp.float32))
    hidden = jnp.maximum(hidden + lin_b, 0.0)
    out_ref[...] = jnp.dot(hidden.astype(jnp.bfloat16), ow_ref[...],
                           preferred_element_type=jnp.float32) + out_b    # [Bt, OUT_PAD]


def _choose_block_b(B, L, ke):
    """Batch tile: multiple of 8, keeps >=2 'parallel' grid steps when the batch
    allows (both v7x TensorCores get work), grows with batch to amortize per-step
    grid overhead, and caps the xcol block at ~4 MiB per buffer (v7x VMEM-safe)."""
    b8 = pl.cdiv(B, 8) * 8
    vmem_cap = max(8, (4 * 1024 * 1024) // max(1, L * ke * 2) // 8 * 8)
    bt = min(256, vmem_cap, max(8, (b8 // 2) // 8 * 8))
    return max(8, bt)


def conv_max_self_attention(x, mask, sequence_lengths, frequencies, params,
                            *, n_heads, kernel_size, block_b=None):
    """x: [B, E, L] (PyTorch NCL), mask: [B, L], sequence_lengths: [B].
    Returns [B, output_dim]."""
    # TODO(synk): assumes mask is the standard prefix mask implied by
    # sequence_lengths (as constructed by callers); arbitrary masks would need
    # the dense mask path.
    del mask, frequencies
    B, E, L = x.shape
    K = kernel_size
    assert K % 2 == 1, "Conv1d 'same' padding here assumes odd kernel_size"
    assert E % n_heads == 0
    pad = K // 2
    H = n_heads
    Dh = E // H
    scale = 1.0 / math.sqrt(Dh)
    out_dim = params['out_b'].shape[-1]
    OUT_PAD = pl.cdiv(out_dim, 128) * 128            # lane-dense output width
    KE = K * E

    Bt = block_b if block_b is not None else _choose_block_b(B, L, KE)
    assert Bt % 8 == 0
    B_pad = pl.cdiv(B, Bt) * Bt

    # --- im2col in the wrapper: kernel sees a ready [Bt, L, K*E] bf16 operand ---
    xt = jnp.transpose(x, (0, 2, 1)).astype(jnp.float32)               # [B, L, E]
    xt = jnp.pad(xt, ((0, B_pad - B), (pad, pad), (0, 0)))             # [B_pad, L+K-1, E]
    xcol = jnp.concatenate([xt[:, k:k + L, :] for k in range(K)],
                           axis=-1).astype(jnp.bfloat16)               # [B_pad, L, K*E]

    # --- sequence lengths as a tiny (B_pad, 1) f32 input (replaces the mask block) ---
    lens = sequence_lengths.astype(jnp.float32).reshape(B, 1)
    lens = jnp.pad(lens, ((0, B_pad - B), (0, 0)), constant_values=float(L))

    # --- weights: bf16 MXU operands, conv flattened, K|V fused, scale folded into Q ---
    cw = params['conv_w'].reshape(KE, E).astype(jnp.bfloat16)          # [K*E, E]
    wq = (params['wq'] * scale).astype(jnp.bfloat16)                   # [E, E]  (scale folded)
    wkv = jnp.concatenate([params['wk'], params['wv']], axis=1).astype(jnp.bfloat16)  # [E, 2E]
    lw = params['lin_w'].astype(jnp.bfloat16)                          # [2E, 32]
    ow = jnp.pad(params['out_w'],
                 ((0, 0), (0, OUT_PAD - out_dim))).astype(jnp.bfloat16)  # [32, OUT_PAD]

    # one-hot head-selector matrices (head reductions/broadcasts as tiny bf16 matmuls)
    hsum = (jnp.arange(E)[:, None] // Dh
            == jnp.arange(H)[None, :]).astype(jnp.bfloat16)            # [E, H]
    hexp = hsum.T                                                      # [H, E]

    # --- all biases in one f32 array, one 128-lane-aligned row per bias ---
    W = pl.cdiv(max(2 * E, OUT_PAD, 128), 128) * 128

    def row(v, n):
        return jnp.pad(v.reshape(1, n), ((0, 0), (0, W - n)))

    bias = jnp.concatenate([
        row(params['conv_b'], E),
        row(params['bq'] * scale, E),
        row(jnp.concatenate([params['bk'], params['bv']], axis=-1), 2 * E),
        row(params['lin_b'], 32),
        row(jnp.pad(params['out_b'].reshape(1, out_dim),
                    ((0, 0), (0, OUT_PAD - out_dim))), OUT_PAD),
    ], axis=0).astype(jnp.float32)                                     # [5, W]

    def const_spec(shape):
        n = len(shape)
        return pl.BlockSpec(shape, lambda i, _n=n: (0,) * _n)

    in_specs = [
        pl.BlockSpec((Bt, L, KE), lambda i: (i, 0, 0)),   # xcol (pre-im2col'd, bf16)
        pl.BlockSpec((Bt, 1), lambda i: (i, 0)),          # sequence lengths (f32)
        const_spec((KE, E)),                              # conv weights (flat)
        const_spec((E, E)),                               # wq (pre-scaled)
        const_spec((E, 2 * E)),                           # wk|wv
        const_spec((E, H)),                               # hsum (bf16)
        const_spec((H, E)),                               # hexp (bf16)
        const_spec((2 * E, 32)),                          # lin_w
        const_spec((32, OUT_PAD)),                        # out_w (lane-padded)
        const_spec((5, W)),                               # packed biases (row-aligned)
    ]

    # VMEM: xcol block capped at ~4 MiB/buffer by _choose_block_b; intermediates
    # are of the same order -> well under default scoped VMEM on v5e/v6e/v7x.
    out = pl.pallas_call(
        partial(_cmsa_kernel, Bt=Bt, L=L, K=K, E=E, H=H),
        out_shape=jax.ShapeDtypeStruct((B_pad, OUT_PAD), jnp.float32),
        grid=(B_pad // Bt,),
        in_specs=in_specs,
        out_specs=pl.BlockSpec((Bt, OUT_PAD), lambda i: (i, 0)),
        compiler_params=pltpu.CompilerParams(dimension_semantics=("parallel",)),
    )(xcol, lens, cw, wq, wkv, hsum, hexp, lw, ow, bias)
    return out[:B, :out_dim]


def reference_forward(x, mask, params, *, n_heads, kernel_size):
    """Plain-JAX reference: module semantics with the same bf16-operand /
    f32-accumulation casts as the kernel (for tight verification)."""
    B, E, L = x.shape
    K = kernel_size
    pad = K // 2
    H = n_heads
    Dh = E // H
    scale = 1.0 / math.sqrt(Dh)
    bf, f32 = jnp.bfloat16, jnp.float32
    maskf = mask.astype(f32)

    xt = jnp.transpose(x, (0, 2, 1)).astype(f32)
    x_pad = jnp.pad(xt, ((0, 0), (pad, pad), (0, 0))).astype(bf)
    xcat = jnp.concatenate([x_pad[:, k:k + L, :] for k in range(K)], axis=-1)   # [B, L, K*E]
    o = jnp.einsum('blc,co->blo', xcat, params['conv_w'].reshape(K * E, E).astype(bf),
                   preferred_element_type=f32)
    o = jax.nn.relu(o + params['conv_b'])                                        # [B, L, E] f32

    q = jnp.sum(o * maskf[:, :, None], axis=1) / jnp.sum(maskf, axis=1, keepdims=True)

    o_bf = o.astype(bf)
    Qm = jnp.dot(q.astype(bf), params['wq'].astype(bf), preferred_element_type=f32) + params['bq']
    Km = jnp.einsum('ble,eo->blo', o_bf, params['wk'].astype(bf),
                    preferred_element_type=f32) + params['bk']
    Vm = jnp.einsum('ble,eo->blo', o_bf, params['wv'].astype(bf),
                    preferred_element_type=f32) + params['bv']

    kq = (Km * Qm[:, None, :]).astype(bf).astype(f32)            # mirror kernel bf16 cast
    energy = kq.reshape(B, L, H, Dh).sum(-1) * scale
    energy = jnp.where(maskf[:, :, None] > 0, energy, -1e10)
    attn = jax.nn.softmax(energy, axis=1)
    attn_b = attn.astype(bf).astype(f32)                         # mirror kernel bf16 cast
    att_out = jnp.sum(attn_b[:, :, :, None] * Vm.reshape(B, L, H, Dh), axis=1).reshape(B, E)

    o2 = jnp.max(o, axis=1)
    hidden = jax.nn.relu(
        jnp.dot(att_out.astype(bf), params['lin_w'][:E].astype(bf), preferred_element_type=f32)
        + jnp.dot(o2.astype(bf), params['lin_w'][E:].astype(bf), preferred_element_type=f32)
        + params['lin_b'])
    return jnp.dot(hidden.astype(bf), params['out_w'].astype(bf),
                   preferred_element_type=f32) + params['out_b']


def init_params(key, E, K, out_dim):
    ks = jax.random.split(key, 12)

    def w(k, shape, s=0.1):
        return s * jax.random.normal(k, shape, jnp.float32)

    return dict(
        conv_w=w(ks[0], (K, E, E)),       # [tap, in, out]
        conv_b=w(ks[1], (1, E)),
        wq=w(ks[2], (E, E)), bq=w(ks[3], (1, E)),
        wk=w(ks[4], (E, E)), bk=w(ks[5], (1, E)),
        wv=w(ks[6], (E, E)), bv=w(ks[7], (1, E)),
        lin_w=w(ks[8], (2 * E, 32)), lin_b=w(ks[9], (1, 32)),
        out_w=w(ks[10], (32, out_dim)), out_b=w(ks[11], (1, out_dim)),
    )


if __name__ == "__main__":
    B, E, L = 16, 32, 16             # batch, embeddings_dim, sequence_length
    K, H, OUT = 7, 8, 12             # kernel_size, n_heads, output_dim

    key = jax.random.PRNGKey(0)
    kx, kl, kp = jax.random.split(key, 3)
    x = jax.random.normal(kx, (B, E, L), jnp.float32)          # [B, E, L] like torch NCL
    sequence_lengths = jax.random.randint(kl, (B,), minval=4, maxval=L + 1)
    mask = (jnp.arange(L)[None, :] < sequence_lengths[:, None]).astype(jnp.float32)
    frequencies = jnp.zeros((B, L), jnp.float32)               # unused by the forward
    params = init_params(kp, E, K, OUT)

    out = conv_max_self_attention(x, mask, sequence_lengths, frequencies, params,
                                  n_heads=H, kernel_size=K)    # auto Bt=8 -> grid=2
    out = jax.block_until_ready(out)

    ref = reference_forward(x, mask, params, n_heads=H, kernel_size=K)
    assert out.shape == (B, OUT), out.shape
    assert jnp.allclose(out, ref, atol=1e-2, rtol=1e-2), (out, ref)
    print("KERNEL_OK")
</pallas_src>

<mosaic_0001>
module attributes {stable_mosaic.version = 11 : i64} {
  func.func @_cmsa_kernel(%arg0: i32, %arg1: memref<8x16x224xbf16, #tpu.memory_space<vmem>>, %arg2: memref<8x1xf32, #tpu.memory_space<vmem>>, %arg3: memref<224x32xbf16, #tpu.memory_space<vmem>>, %arg4: memref<32x32xbf16, #tpu.memory_space<vmem>>, %arg5: memref<32x64xbf16, #tpu.memory_space<vmem>>, %arg6: memref<32x8xbf16, #tpu.memory_space<vmem>>, %arg7: memref<8x32xbf16, #tpu.memory_space<vmem>>, %arg8: memref<64x32xbf16, #tpu.memory_space<vmem>>, %arg9: memref<32x128xbf16, #tpu.memory_space<vmem>>, %arg10: memref<5x128xf32, #tpu.memory_space<vmem>>, %arg11: memref<8x128xf32, #tpu.memory_space<vmem>>) attributes {dimension_semantics = [#tpu.dimension_semantics<parallel>], iteration_bounds = array<i64: 2>, scalar_prefetch = 0 : i64, scratch_operands = 0 : i64, tpu.core_type = #tpu.core_type<tc>, window_params = [{transform_indices = @transform_0, window_bounds = array<i64: 8, 16, 224>}, {transform_indices = @transform_1, window_bounds = array<i64: 8, 1>}, {pipeline_mode = #tpu.pipeline_mode<synchronous>, transform_indices = @transform_2, window_bounds = array<i64: 224, 32>}, {pipeline_mode = #tpu.pipeline_mode<synchronous>, transform_indices = @transform_3, window_bounds = array<i64: 32, 32>}, {pipeline_mode = #tpu.pipeline_mode<synchronous>, transform_indices = @transform_4, window_bounds = array<i64: 32, 64>}, {pipeline_mode = #tpu.pipeline_mode<synchronous>, transform_indices = @transform_5, window_bounds = array<i64: 32, 8>}, {pipeline_mode = #tpu.pipeline_mode<synchronous>, transform_indices = @transform_6, window_bounds = array<i64: 8, 32>}, {pipeline_mode = #tpu.pipeline_mode<synchronous>, transform_indices = @transform_7, window_bounds = array<i64: 64, 32>}, {pipeline_mode = #tpu.pipeline_mode<synchronous>, transform_indices = @transform_8, window_bounds = array<i64: 32, 128>}, {pipeline_mode = #tpu.pipeline_mode<synchronous>, transform_indices = @transform_9, window_bounds = array<i64: 5, 128>}, {transform_indices = @transform_10, window_bounds = array<i64: 8, 128>}]} {
    %c0 = arith.constant 0 : index
    %c0_0 = arith.constant 0 : index
    %0 = vector.load %arg10[%c0, %c0_0] : memref<5x128xf32, #tpu.memory_space<vmem>>, vector<1x32xf32>
    %c1 = arith.constant 1 : index
    %c0_1 = arith.constant 0 : index
    %1 = vector.load %arg10[%c1, %c0_1] : memref<5x128xf32, #tpu.memory_space<vmem>>, vector<1x32xf32>
    %c2 = arith.constant 2 : index
    %c0_2 = arith.constant 0 : index
    %2 = vector.load %arg10[%c2, %c0_2] : memref<5x128xf32, #tpu.memory_space<vmem>>, vector<1x64xf32>
    %c3 = arith.constant 3 : index
    %c0_3 = arith.constant 0 : index
    %3 = vector.load %arg10[%c3, %c0_3] : memref<5x128xf32, #tpu.memory_space<vmem>>, vector<1x32xf32>
    %c4 = arith.constant 4 : index
    %c0_4 = arith.constant 0 : index
    %4 = vector.load %arg10[%c4, %c0_4] : memref<5x128xf32, #tpu.memory_space<vmem>>, vector<1x128xf32>
    %c0_5 = arith.constant 0 : index
    %c0_6 = arith.constant 0 : index
    %c0_7 = arith.constant 0 : index
    %5 = vector.load %arg1[%c0_5, %c0_6, %c0_7] : memref<8x16x224xbf16, #tpu.memory_space<vmem>>, vector<8x16x224xbf16>
    %6 = vector.shape_cast %5 : vector<8x16x224xbf16> to vector<128x224xbf16>
    %c0_8 = arith.constant 0 : index
    %c0_9 = arith.constant 0 : index
    %7 = vector.load %arg3[%c0_8, %c0_9] : memref<224x32xbf16, #tpu.memory_space<vmem>>, vector<224x32xbf16>
    %cst = arith.constant dense<0.000000e+00> : vector<128x32xf32>
    %8 = tpu.matmul %6, %7, %cst {dimension_numbers = #tpu.dot_dimension_numbers<[1], [0], [0], [1], [0, 0, 1, 1], [], []>} : vector<128x224xbf16>, vector<224x32xbf16>, vector<128x32xf32> -> vector<128x32xf32>
    %9 = vector.broadcast %0 : vector<1x32xf32> to vector<128x32xf32>
    %10 = arith.addf %8, %9 : vector<128x32xf32>
    %cst_10 = arith.constant 0.000000e+00 : f32
    %11 = vector.broadcast %cst_10 : f32 to vector<128x32xf32>
    %12 = arith.maximumf %10, %11 : vector<128x32xf32>
    %13 = vector.shape_cast %12 : vector<128x32xf32> to vector<8x16x32xf32>
    %c0_11 = arith.constant 0 : index
    %c0_12 = arith.constant 0 : index
    %14 = vector.load %arg2[%c0_11, %c0_12] : memref<8x1xf32, #tpu.memory_space<vmem>>, vector<8x1xf32>
    %15 = arith.fptosi %14 : vector<8x1xf32> to vector<8x1xi32>
    %cst_13 = arith.constant 1.000000e+00 : f32
    %16 = vector.broadcast %cst_13 : f32 to vector<8x1xf32>
    %17 = arith.maximumf %14, %16 : vector<8x1xf32>
    %18 = tpu.iota {dimensions = array<i32: 1>} : vector<8x16x32xi32>
    %19 = vector.shape_cast %15 : vector<8x1xi32> to vector<8x1x1xi32>
    %20 = vector.broadcast %19 : vector<8x1x1xi32> to vector<8x16x32xi32>
    %21 = arith.cmpi slt, %18, %20 : vector<8x16x32xi32>
    %22 = tpu.iota {dimensions = array<i32: 1>} : vector<8x16x8xi32>
    %23 = vector.shape_cast %15 : vector<8x1xi32> to vector<8x1x1xi32>
    %24 = vector.broadcast %23 : vector<8x1x1xi32> to vector<8x16x8xi32>
    %25 = arith.cmpi slt, %22, %24 : vector<8x16x8xi32>
    %cst_14 = arith.constant 0.000000e+00 : f32
    %26 = vector.broadcast %cst_14 : f32 to vector<8x16x32xf32>
    %27 = arith.select %21, %13, %26 : vector<8x16x32xi1>, vector<8x16x32xf32>
    %cst_15 = arith.constant dense<0.000000e+00> : vector<8x32xf32>
    %28 = vector.multi_reduction <add>, %27, %cst_15 [1] : vector<8x16x32xf32> to vector<8x32xf32>
    %29 = tpu.reciprocal %17 {approx = true} : vector<8x1xf32> -> vector<8x1xf32>
    %30 = vector.broadcast %29 : vector<8x1xf32> to vector<8x32xf32>
    %31 = arith.mulf %28, %30 : vector<8x32xf32>
    %32 = arith.truncf %12 : vector<128x32xf32> to vector<128x32xbf16>
    %33 = arith.truncf %31 : vector<8x32xf32> to vector<8x32xbf16>
    %c0_16 = arith.constant 0 : index
    %c0_17 = arith.constant 0 : index
    %34 = vector.load %arg4[%c0_16, %c0_17] : memref<32x32xbf16, #tpu.memory_space<vmem>>, vector<32x32xbf16>
    %cst_18 = arith.constant dense<0.000000e+00> : vector<8x32xf32>
    %35 = tpu.matmul %33, %34, %cst_18 {dimension_numbers = #tpu.dot_dimension_numbers<[1], [0], [0], [1], [0, 0, 1, 1], [], []>} : vector<8x32xbf16>, vector<32x32xbf16>, vector<8x32xf32> -> vector<8x32xf32>
    %36 = vector.broadcast %1 : vector<1x32xf32> to vector<8x32xf32>
    %37 = arith.addf %35, %36 : vector<8x32xf32>
    %c0_19 = arith.constant 0 : index
    %c0_20 = arith.constant 0 : index
    %38 = vector.load %arg5[%c0_19, %c0_20] : memref<32x64xbf16, #tpu.memory_space<vmem>>, vector<32x64xbf16>
    %cst_21 = arith.constant dense<0.000000e+00> : vector<128x64xf32>
    %39 = tpu.matmul %32, %38, %cst_21 {dimension_numbers = #tpu.dot_dimension_numbers<[1], [0], [0], [1], [0, 0, 1, 1], [], []>} : vector<128x32xbf16>, vector<32x64xbf16>, vector<128x64xf32> -> vector<128x64xf32>
    %40 = vector.broadcast %2 : vector<1x64xf32> to vector<128x64xf32>
    %41 = arith.addf %39, %40 : vector<128x64xf32>
    %42 = vector.shape_cast %41 : vector<128x64xf32> to vector<8x16x64xf32>
    %43 = vector.extract_strided_slice %42 {offsets = [0, 0, 0], sizes = [8, 16, 32], strides = [1, 1, 1]} : vector<8x16x64xf32> to vector<8x16x32xf32>
    %44 = vector.shape_cast %37 : vector<8x32xf32> to vector<8x1x32xf32>
    %45 = vector.broadcast %44 : vector<8x1x32xf32> to vector<8x16x32xf32>
    %46 = arith.mulf %43, %45 : vector<8x16x32xf32>
    %47 = vector.shape_cast %46 : vector<8x16x32xf32> to vector<128x32xf32>
    %48 = arith.truncf %47 : vector<128x32xf32> to vector<128x32xbf16>
    %c0_22 = arith.constant 0 : index
    %c0_23 = arith.constant 0 : index
    %49 = vector.load %arg6[%c0_22, %c0_23] : memref<32x8xbf16, #tpu.memory_space<vmem>>, vector<32x8xbf16>
    %cst_24 = arith.constant dense<0.000000e+00> : vector<128x8xf32>
    %50 = tpu.matmul %48, %49, %cst_24 {dimension_numbers = #tpu.dot_dimension_numbers<[1], [0], [0], [1], [0, 0, 1, 1], [], []>} : vector<128x32xbf16>, vector<32x8xbf16>, vector<128x8xf32> -> vector<128x8xf32>
    %51 = vector.shape_cast %50 : vector<128x8xf32> to vector<8x16x8xf32>
    %cst_25 = arith.constant -1.000000e+10 : f32
    %52 = vector.broadcast %cst_25 : f32 to vector<8x16x8xf32>
    %53 = arith.select %25, %51, %52 : vector<8x16x8xi1>, vector<8x16x8xf32>
    %cst_26 = arith.constant dense<0xFF800000> : vector<8x8xf32>
    %54 = vector.multi_reduction <maximumf>, %53, %cst_26 [1] : vector<8x16x8xf32> to vector<8x8xf32>
    %55 = vector.shape_cast %54 : vector<8x8xf32> to vector<8x1x8xf32>
    %56 = vector.broadcast %55 : vector<8x1x8xf32> to vector<8x16x8xf32>
    %57 = arith.subf %53, %56 : vector<8x16x8xf32>
    %58 = math.exp %57 : vector<8x16x8xf32>
    %cst_27 = arith.constant dense<0.000000e+00> : vector<8x8xf32>
    %59 = vector.multi_reduction <add>, %58, %cst_27 [1] : vector<8x16x8xf32> to vector<8x8xf32>
    %60 = vector.shape_cast %59 : vector<8x8xf32> to vector<8x1x8xf32>
    %61 = tpu.reciprocal %60 {approx = true} : vector<8x1x8xf32> -> vector<8x1x8xf32>
    %62 = vector.broadcast %61 : vector<8x1x8xf32> to vector<8x16x8xf32>
    %63 = arith.mulf %58, %62 : vector<8x16x8xf32>
    %64 = vector.shape_cast %63 : vector<8x16x8xf32> to vector<128x8xf32>
    %65 = arith.truncf %64 : vector<128x8xf32> to vector<128x8xbf16>
    %c0_28 = arith.constant 0 : index
    %c0_29 = arith.constant 0 : index
    %66 = vector.load %arg7[%c0_28, %c0_29] : memref<8x32xbf16, #tpu.memory_space<vmem>>, vector<8x32xbf16>
    %cst_30 = arith.constant dense<0.000000e+00> : vector<128x32xf32>
    %67 = tpu.matmul %65, %66, %cst_30 {dimension_numbers = #tpu.dot_dimension_numbers<[1], [0], [0], [1], [0, 0, 1, 1], [], []>} : vector<128x8xbf16>, vector<8x32xbf16>, vector<128x32xf32> -> vector<128x32xf32>
    %68 = vector.shape_cast %67 : vector<128x32xf32> to vector<8x16x32xf32>
    %69 = vector.extract_strided_slice %42 {offsets = [0, 0, 32], sizes = [8, 16, 32], strides = [1, 1, 1]} : vector<8x16x64xf32> to vector<8x16x32xf32>
    %70 = arith.mulf %68, %69 : vector<8x16x32xf32>
    %cst_31 = arith.constant dense<0.000000e+00> : vector<8x32xf32>
    %71 = vector.multi_reduction <add>, %70, %cst_31 [1] : vector<8x16x32xf32> to vector<8x32xf32>
    %cst_32 = arith.constant dense<0xFF800000> : vector<8x32xf32>
    %72 = vector.multi_reduction <maximumf>, %13, %cst_32 [1] : vector<8x16x32xf32> to vector<8x32xf32>
    %73 = arith.truncf %71 : vector<8x32xf32> to vector<8x32xbf16>
    %c0_33 = arith.constant 0 : index
    %c0_34 = arith.constant 0 : index
    %74 = vector.load %arg8[%c0_33, %c0_34] : memref<64x32xbf16, #tpu.memory_space<vmem>>, vector<32x32xbf16>
    %cst_35 = arith.constant dense<0.000000e+00> : vector<8x32xf32>
    %75 = tpu.matmul %73, %74, %cst_35 {dimension_numbers = #tpu.dot_dimension_numbers<[1], [0], [0], [1], [0, 0, 1, 1], [], []>} : vector<8x32xbf16>, vector<32x32xbf16>, vector<8x32xf32> -> vector<8x32xf32>
    %76 = arith.truncf %72 : vector<8x32xf32> to vector<8x32xbf16>
    %c32 = arith.constant 32 : index
    %c0_36 = arith.constant 0 : index
    %77 = vector.load %arg8[%c32, %c0_36] : memref<64x32xbf16, #tpu.memory_space<vmem>>, vector<32x32xbf16>
    %cst_37 = arith.constant dense<0.000000e+00> : vector<8x32xf32>
    %78 = tpu.matmul %76, %77, %cst_37 {dimension_numbers = #tpu.dot_dimension_numbers<[1], [0], [0], [1], [0, 0, 1, 1], [], []>} : vector<8x32xbf16>, vector<32x32xbf16>, vector<8x32xf32> -> vector<8x32xf32>
    %79 = arith.addf %75, %78 : vector<8x32xf32>
    %80 = vector.broadcast %3 : vector<1x32xf32> to vector<8x32xf32>
    %81 = arith.addf %79, %80 : vector<8x32xf32>
    %cst_38 = arith.constant 0.000000e+00 : f32
    %82 = vector.broadcast %cst_38 : f32 to vector<8x32xf32>
    %83 = arith.maximumf %81, %82 : vector<8x32xf32>
    %84 = arith.truncf %83 : vector<8x32xf32> to vector<8x32xbf16>
    %c0_39 = arith.constant 0 : index
    %c0_40 = arith.constant 0 : index
    %85 = vector.load %arg9[%c0_39, %c0_40] : memref<32x128xbf16, #tpu.memory_space<vmem>>, vector<32x128xbf16>
    %cst_41 = arith.constant dense<0.000000e+00> : vector<8x128xf32>
    %86 = tpu.matmul %84, %85, %cst_41 {dimension_numbers = #tpu.dot_dimension_numbers<[1], [0], [0], [1], [0, 0, 1, 1], [], []>} : vector<8x32xbf16>, vector<32x128xbf16>, vector<8x128xf32> -> vector<8x128xf32>
    %87 = vector.broadcast %4 : vector<1x128xf32> to vector<8x128xf32>
    %88 = arith.addf %86, %87 : vector<8x128xf32>
    %c0_42 = arith.constant 0 : index
    %c0_43 = arith.constant 0 : index
    %89 = vector.load %arg11[%c0_42, %c0_43] : memref<8x128xf32, #tpu.memory_space<vmem>>, vector<8x128xf32>
    tpu.vector_store %arg11[%c0_42, %c0_43], %88 {strides = array<i32>} : memref<8x128xf32, #tpu.memory_space<vmem>>, vector<8x128xf32>,
    return
  }
  func.func @transform_0(%arg0: i32) -> (i32, i32, i32) {
    %c0_i32 = arith.constant 0 : i32
    %c0_i32_0 = arith.constant 0 : i32
    %c0_i32_1 = arith.constant 0 : i32
    return %arg0, %c0_i32, %c0_i32_0 : i32, i32, i32
  }
  func.func @transform_1(%arg0: i32) -> (i32, i32) {
    %c0_i32 = arith.constant 0 : i32
    %c0_i32_0 = arith.constant 0 : i32
    return %arg0, %c0_i32 : i32, i32
  }
  func.func @transform_2(%arg0: i32) -> (i32, i32) {
    %c0_i32 = arith.constant 0 : i32
    %c0_i32_0 = arith.constant 0 : i32
    %c0_i32_1 = arith.constant 0 : i32
    return %c0_i32, %c0_i32_0 : i32, i32
  }
  func.func @transform_3(%arg0: i32) -> (i32, i32) {
    %c0_i32 = arith.constant 0 : i32
    %c0_i32_0 = arith.constant 0 : i32
    %c0_i32_1 = arith.constant 0 : i32
    return %c0_i32, %c0_i32_0 : i32, i32
  }
  func.func @transform_4(%arg0: i32) -> (i32, i32) {
    %c0_i32 = arith.constant 0 : i32
    %c0_i32_0 = arith.constant 0 : i32
    %c0_i32_1 = arith.constant 0 : i32
    return %c0_i32, %c0_i32_0 : i32, i32
  }
  func.func @transform_5(%arg0: i32) -> (i32, i32) {
    %c0_i32 = arith.constant 0 : i32
    %c0_i32_0 = arith.constant 0 : i32
    %c0_i32_1 = arith.constant 0 : i32
    return %c0_i32, %c0_i32_0 : i32, i32
  }
  func.func @transform_6(%arg0: i32) -> (i32, i32) {
    %c0_i32 = arith.constant 0 : i32
    %c0_i32_0 = arith.constant 0 : i32
    %c0_i32_1 = arith.constant 0 : i32
    return %c0_i32, %c0_i32_0 : i32, i32
  }
  func.func @transform_7(%arg0: i32) -> (i32, i32) {
    %c0_i32 = arith.constant 0 : i32
    %c0_i32_0 = arith.constant 0 : i32
    %c0_i32_1 = arith.constant 0 : i32
    return %c0_i32, %c0_i32_0 : i32, i32
  }
  func.func @transform_8(%arg0: i32) -> (i32, i32) {
    %c0_i32 = arith.constant 0 : i32
    %c0_i32_0 = arith.constant 0 : i32
    %c0_i32_1 = arith.constant 0 : i32
    return %c0_i32, %c0_i32_0 : i32, i32
  }
  func.func @transform_9(%arg0: i32) -> (i32, i32) {
    %c0_i32 = arith.constant 0 : i32
    %c0_i32_0 = arith.constant 0 : i32
    %c0_i32_1 = arith.constant 0 : i32
    return %c0_i32, %c0_i32_0 : i32, i32
  }
  func.func @transform_10(%arg0: i32) -> (i32, i32) {
    %c0_i32 = arith.constant 0 : i32
    %c0_i32_0 = arith.constant 0 : i32
    return %arg0, %c0_i32 : i32, i32
  }
}

</mosaic_0001>

<llo_original>
// kernel: tpu_custom_call.1
$region0: #{tpu_custom_call.1}
  #allocation0 [shape = 'u32[]', space=smem, size = 0x4, offset = 0x4, fixed_abs, tag = 'smem constant byte address 0x4 - core index']
  #allocation1 [shape = 'u32[144,128]{1,0:T(1,128)}', space=vmem, size = 0x12000, scoped, tag = 'internal scratch']
  %s0 = inlined_call_operand.hbm [shape: bf16[16,16,224], index: 0, kind: input, shape index: {}]
  %s1 = inlined_call_operand.vmem [shape: f32[16,1], index: 1, kind: input, shape index: {}]
  %s2 = inlined_call_operand.vmem [shape: bf16[224,32], index: 2, kind: input, shape index: {}]
  %s3 = inlined_call_operand.vmem [shape: bf16[32,32], index: 3, kind: input, shape index: {}]
  %s4 = inlined_call_operand.vmem [shape: bf16[32,64], index: 4, kind: input, shape index: {}]
  %s5 = inlined_call_operand.vmem [shape: bf16[32,8], index: 5, kind: input, shape index: {}]
  %s6 = inlined_call_operand.vmem [shape: bf16[8,32], index: 6, kind: input, shape index: {}]
  %s7 = inlined_call_operand.vmem [shape: bf16[64,32], index: 7, kind: input, shape index: {}]
  %s8 = inlined_call_operand.vmem [shape: bf16[32,128], index: 8, kind: input, shape index: {}]
  %s9 = inlined_call_operand.vmem [shape: f32[5,128], index: 9, kind: input, shape index: {}]
  %s10 = inlined_call_operand.hbm [shape: f32[16,128], index: 10, kind: output, shape index: {}]
  %s11 = sld [smem:[#allocation0]]
  $region77: #{tpu_custom_call.1} parent=0
    _
  %s13 = ssub.s32 1, %s11
  %s14 = scalar_select 0, %s13, %s11
  $region1: #{tpu_custom_call.1} parent=0
    #allocation2 [shape = 'u8[131072]{0}', space=vmem, size = 0x20000, scoped, tag = 'input window, operand 0']
    #allocation3 [shape = 's32[2]{0}', space=sflag, size = 0x8, scoped, tag = 'scoped memory for tpu_custom_call.1']
    #allocation4 [shape = 's32[2]{0}', space=sflag, size = 0x8, scoped, tag = 'scoped memory for tpu_custom_call.1']
    #allocation5 [shape = 'u8[8192]{0}', space=vmem, size = 0x2000, scoped, tag = 'output window, operand 0']
    %15 = vsyncpa [#allocation3], 0
    %s16 = scalar_lea.sflag [#allocation3], 1
    %17 = vsyncpa %s16, 0
    %18 = vsyncpa [#allocation4], 0
    %s19 = scalar_lea.sflag [#allocation4], 1
    %20 = vsyncpa %s19, 0
    loop: start=0, step=1, limit=4
    $region2: #{tpu_custom_call.1} parent=1 // loop_pre_header
      _
    $region3: #{tpu_custom_call.1} parent=1 // loop_header
      %s22 = sphi 0, %s26
      %p23 = scmp.ge.s32.totalorder %s22, 4
      %s32 = sphi 0, %s34
      %s35 = sphi 0, %s32
      %s36 = sphi 0, %s35
      %s52 = sphi 0, %s36
      %s58 = sphi 0, %s60
      %s61 = sphi 0, %s58
      %s62 = sphi 0, %s61
      %s78 = sphi 0, %s62
      %s82 = sphi 0, %s82
      %s84 = sphi 0, %s82
      %s85 = sphi 0, %s84
      %s99 = sphi 0, %s85
      %s103 = sphi 0, %s103
      %s105 = sphi 0, %s103
      %s106 = sphi 0, %s105
      %s120 = sphi 0, %s106
      %s124 = sphi 0, %s124
      %s126 = sphi 0, %s124
      %s127 = sphi 0, %s126
      %s141 = sphi 0, %s127
      %s145 = sphi 0, %s145
      %s147 = sphi 0, %s145
      %s148 = sphi 0, %s147
      %s162 = sphi 0, %s148
      %s166 = sphi 0, %s166
      %s168 = sphi 0, %s166
      %s169 = sphi 0, %s168
      %s183 = sphi 0, %s169
      %s187 = sphi 0, %s187
      %s189 = sphi 0, %s187
      %s190 = sphi 0, %s189
      %s204 = sphi 0, %s190
      %s208 = sphi 0, %s208
      %s210 = sphi 0, %s208
      %s211 = sphi 0, %s210
      %s225 = sphi 0, %s211
      %s229 = sphi 0, %s229
      %s231 = sphi 0, %s229
      %s232 = sphi 0, %s231
      %s246 = sphi 0, %s232
      %s252 = sphi 0, %s254
      %s255 = sphi 0, %s252
      %s256 = sphi 0, %s255
      %s272 = sphi 0, %s256
    $region4: #{tpu_custom_call.1} parent=1 // loop_header_branch
      %25 = sbr.rel (%p23) target = $region8
    $region5: #{tpu_custom_call.1} parent=1 // loop_body
      %s27 = ssub.s32 %s22, 1
      %s28 = ssub.s32 %s22, 2
      %s29 = sadd.s32 %s22, 1
      %s30 = ssub.s32 %s22, %s29
      %p31 = scmp.eq.s32.totalorder %s30, 0
      %s33 = sadd.s32 %s32, 1
      %s34 = scalar_select %p31, %s32, %s33
      %p37 = pneg %p31
      %p38 = scmp.eq.s32.totalorder %s22, 1
      %p39 = por %p37, %p38
      %p40 = scmp.ne.s32.totalorder %s32, %s35
      %p41 = scmp.eq.s32.totalorder %s22, 0
      %p42 = por %p40, %p41
      %p43 = scmp.ne.s32.totalorder %s32, %s35
      %p44 = scmp.eq.s32.totalorder %s27, 1
      %p45 = por %p43, %p44
      %p46 = scmp.ne.s32.totalorder %s35, %s36
      %p47 = scmp.eq.s32.totalorder %s27, 0
      %p48 = por %p46, %p47
      %p49 = scmp.ne.s32.totalorder %s35, %s36
      %p50 = scmp.eq.s32.totalorder %s28, 1
      %p51 = por %p49, %p50
      %p53 = scmp.ne.s32.totalorder %s36, %s52
      %p54 = scmp.eq.s32.totalorder %s28, 0
      %p55 = por %p53, %p54
      %s56 = ssub.s32 %s22, %s29
      %p57 = scmp.eq.s32.totalorder %s56, 0
      %s59 = sadd.s32 %s58, 1
      %s60 = scalar_select %p57, %s58, %s59
      %p63 = pneg %p57
      %p64 = scmp.eq.s32.totalorder %s22, 1
      %p65 = por %p63, %p64
      %p66 = scmp.ne.s32.totalorder %s58, %s61
      %p67 = scmp.eq.s32.totalorder %s22, 0
      %p68 = por %p66, %p67
      %p69 = scmp.ne.s32.totalorder %s58, %s61
      %p70 = scmp.eq.s32.totalorder %s27, 1
      %p71 = por %p69, %p70
      %p72 = scmp.ne.s32.totalorder %s61, %s62
      %p73 = scmp.eq.s32.totalorder %s27, 0
      %p74 = por %p72, %p73
      %p75 = scmp.ne.s32.totalorder %s61, %s62
      %p76 = scmp.eq.s32.totalorder %s28, 1
      %p77 = por %p75, %p76
      %p79 = scmp.ne.s32.totalorder %s62, %s78
      %p80 = scmp.eq.s32.totalorder %s28, 0
      %p81 = por %p79, %p80
      %s83 = sadd.s32 %s82, 1
      %p86 = scmp.eq.s32.totalorder %s22, 1
      %p87 = scmp.ne.s32.totalorder %s82, %s84
      %p88 = scmp.eq.s32.totalorder %s22, 0
      %p89 = por %p87, %p88
      %p90 = scmp.ne.s32.totalorder %s82, %s84
      %p91 = scmp.eq.s32.totalorder %s27, 1
      %p92 = por %p90, %p91
      %p93 = scmp.ne.s32.totalorder %s84, %s85
      %p94 = scmp.eq.s32.totalorder %s27, 0
      %p95 = por %p93, %p94
      %p96 = scmp.ne.s32.totalorder %s84, %s85
      %p97 = scmp.eq.s32.totalorder %s28, 1
      %p98 = por %p96, %p97
      %p100 = scmp.ne.s32.totalorder %s85, %s99
      %p101 = scmp.eq.s32.totalorder %s28, 0
      %p102 = por %p100, %p101
      %s104 = sadd.s32 %s103, 1
      %p107 = scmp.eq.s32.totalorder %s22, 1
      %p108 = scmp.ne.s32.totalorder %s103, %s105
      %p109 = scmp.eq.s32.totalorder %s22, 0
      %p110 = por %p108, %p109
      %p111 = scmp.ne.s32.totalorder %s103, %s105
      %p112 = scmp.eq.s32.totalorder %s27, 1
      %p113 = por %p111, %p112
      %p114 = scmp.ne.s32.totalorder %s105, %s106
      %p115 = scmp.eq.s32.totalorder %s27, 0
      %p116 = por %p114, %p115
      %p117 = scmp.ne.s32.totalorder %s105, %s106
      %p118 = scmp.eq.s32.totalorder %s28, 1
      %p119 = por %p117, %p118
      %p121 = scmp.ne.s32.totalorder %s106, %s120
      %p122 = scmp.eq.s32.totalorder %s28, 0
      %p123 = por %p121, %p122
      %s125 = sadd.s32 %s124, 1
      %p128 = scmp.eq.s32.totalorder %s22, 1
      %p129 = scmp.ne.s32.totalorder %s124, %s126
      %p130 = scmp.eq.s32.totalorder %s22, 0
      %p131 = por %p129, %p130
      %p132 = scmp.ne.s32.totalorder %s124, %s126
      %p133 = scmp.eq.s32.totalorder %s27, 1
      %p134 = por %p132, %p133
      %p135 = scmp.ne.s32.totalorder %s126, %s127
      %p136 = scmp.eq.s32.totalorder %s27, 0
      %p137 = por %p135, %p136
      %p138 = scmp.ne.s32.totalorder %s126, %s127
      %p139 = scmp.eq.s32.totalorder %s28, 1
      %p140 = por %p138, %p139
      %p142 = scmp.ne.s32.totalorder %s127, %s141
      %p143 = scmp.eq.s32.totalorder %s28, 0
      %p144 = por %p142, %p143
      %s146 = sadd.s32 %s145, 1
      %p149 = scmp.eq.s32.totalorder %s22, 1
      %p150 = scmp.ne.s32.totalorder %s145, %s147
      %p151 = scmp.eq.s32.totalorder %s22, 0
      %p152 = por %p150, %p151
      %p153 = scmp.ne.s32.totalorder %s145, %s147
      %p154 = scmp.eq.s32.totalorder %s27, 1
      %p155 = por %p153, %p154
      %p156 = scmp.ne.s32.totalorder %s147, %s148
      %p157 = scmp.eq.s32.totalorder %s27, 0
      %p158 = por %p156, %p157
      %p159 = scmp.ne.s32.totalorder %s147, %s148
      %p160 = scmp.eq.s32.totalorder %s28, 1
      %p161 = por %p159, %p160
      %p163 = scmp.ne.s32.totalorder %s148, %s162
      %p164 = scmp.eq.s32.totalorder %s28, 0
      %p165 = por %p163, %p164
      %s167 = sadd.s32 %s166, 1
      %p170 = scmp.eq.s32.totalorder %s22, 1
      %p171 = scmp.ne.s32.totalorder %s166, %s168
      %p172 = scmp.eq.s32.totalorder %s22, 0
      %p173 = por %p171, %p172
      %p174 = scmp.ne.s32.totalorder %s166, %s168
      %p175 = scmp.eq.s32.totalorder %s27, 1
      %p176 = por %p174, %p175
      %p177 = scmp.ne.s32.totalorder %s168, %s169
      %p178 = scmp.eq.s32.totalorder %s27, 0
      %p179 = por %p177, %p178
      %p180 = scmp.ne.s32.totalorder %s168, %s169
      %p181 = scmp.eq.s32.totalorder %s28, 1
      %p182 = por %p180, %p181
      %p184 = scmp.ne.s32.totalorder %s169, %s183
      %p185 = scmp.eq.s32.totalorder %s28, 0
      %p186 = por %p184, %p185
      %s188 = sadd.s32 %s187, 1
      %p191 = scmp.eq.s32.totalorder %s22, 1
      %p192 = scmp.ne.s32.totalorder %s187, %s189
      %p193 = scmp.eq.s32.totalorder %s22, 0
      %p194 = por %p192, %p193
      %p195 = scmp.ne.s32.totalorder %s187, %s189
      %p196 = scmp.eq.s32.totalorder %s27, 1
      %p197 = por %p195, %p196
      %p198 = scmp.ne.s32.totalorder %s189, %s190
      %p199 = scmp.eq.s32.totalorder %s27, 0
      %p200 = por %p198, %p199
      %p201 = scmp.ne.s32.totalorder %s189, %s190
      %p202 = scmp.eq.s32.totalorder %s28, 1
      %p203 = por %p201, %p202
      %p205 = scmp.ne.s32.totalorder %s190, %s204
      %p206 = scmp.eq.s32.totalorder %s28, 0
      %p207 = por %p205, %p206
      %s209 = sadd.s32 %s208, 1
      %p212 = scmp.eq.s32.totalorder %s22, 1
      %p213 = scmp.ne.s32.totalorder %s208, %s210
      %p214 = scmp.eq.s32.totalorder %s22, 0
      %p215 = por %p213, %p214
      %p216 = scmp.ne.s32.totalorder %s208, %s210
      %p217 = scmp.eq.s32.totalorder %s27, 1
      %p218 = por %p216, %p217
      %p219 = scmp.ne.s32.totalorder %s210, %s211
      %p220 = scmp.eq.s32.totalorder %s27, 0
      %p221 = por %p219, %p220
      %p222 = scmp.ne.s32.totalorder %s210, %s211
      %p223 = scmp.eq.s32.totalorder %s28, 1
      %p224 = por %p222, %p223
      %p226 = scmp.ne.s32.totalorder %s211, %s225
      %p227 = scmp.eq.s32.totalorder %s28, 0
      %p228 = por %p226, %p227
      %s230 = sadd.s32 %s229, 1
      %p233 = scmp.eq.s32.totalorder %s22, 1
      %p234 = scmp.ne.s32.totalorder %s229, %s231
      %p235 = scmp.eq.s32.totalorder %s22, 0
      %p236 = por %p234, %p235
      %p237 = scmp.ne.s32.totalorder %s229, %s231
      %p238 = scmp.eq.s32.totalorder %s27, 1
      %p239 = por %p237, %p238
      %p240 = scmp.ne.s32.totalorder %s231, %s232
      %p241 = scmp.eq.s32.totalorder %s27, 0
      %p242 = por %p240, %p241
      %p243 = scmp.ne.s32.totalorder %s231, %s232
      %p244 = scmp.eq.s32.totalorder %s28, 1
      %p245 = por %p243, %p244
      %p247 = scmp.ne.s32.totalorder %s232, %s246
      %p248 = scmp.eq.s32.totalorder %s28, 0
      %p249 = por %p247, %p248
      %s250 = ssub.s32 %s22, %s29
      %p251 = scmp.eq.s32.totalorder %s250, 0
      %s253 = sadd.s32 %s252, 1
      %s254 = scalar_select %p251, %s252, %s253
      %p257 = pneg %p251
      %p258 = scmp.eq.s32.totalorder %s22, 1
      %p259 = por %p257, %p258
      %p260 = scmp.ne.s32.totalorder %s252, %s255
      %p261 = scmp.eq.s32.totalorder %s22, 0
      %p262 = por %p260, %p261
      %p263 = scmp.ne.s32.totalorder %s252, %s255
      %p264 = scmp.eq.s32.totalorder %s27, 1
      %p265 = por %p263, %p264
      %p266 = scmp.ne.s32.totalorder %s255, %s256
      %p267 = scmp.eq.s32.totalorder %s27, 0
      %p268 = por %p266, %p267
      %p269 = scmp.ne.s32.totalorder %s255, %s256
      %p270 = scmp.eq.s32.totalorder %s28, 1
      %p271 = por %p269, %p270
      %p273 = scmp.ne.s32.totalorder %s256, %s272
      %p274 = scmp.eq.s32.totalorder %s28, 0
      %p275 = por %p273, %p274
      %p276 = scmp.le.s32.totalorder 1, %s22
      %p277 = scmp.lt.s32.totalorder %s22, 3
      %p278 = pnand %p276, %p277
      %p279 = pneg %p278
      // Predicated region
      $region9: #{tpu_custom_call.1} parent=5 // pred_check
        _
      $region10: #{tpu_custom_call.1} parent=5 // pred_check_branch
        %281 = sbr.rel (%p278) target = $region12
      $region11: #{tpu_custom_call.1} parent=5 // pred_region
        %s282 = ssub.s32 %s22, 1
        // Predicated region
        $region13: #{tpu_custom_call.1} parent=11 // pred_check
          %p283 = pneg %p95
        $region14: #{tpu_custom_call.1} parent=11 // pred_check_branch
          %285 = sbr.rel (%p283) target = $region16
        $region15: #{tpu_custom_call.1} parent=11 // pred_region
          _
        $region16: #{tpu_custom_call.1} parent=11 // pred_fallthru
          _
        // Predicated region
        $region17: #{tpu_custom_call.1} parent=11 // pred_check
          %p286 = pneg %p116
        $region18: #{tpu_custom_call.1} parent=11 // pred_check_branch
          %288 = sbr.rel (%p286) target = $region20
        $region19: #{tpu_custom_call.1} parent=11 // pred_region
          _
        $region20: #{tpu_custom_call.1} parent=11 // pred_fallthru
          _
        // Predicated region
        $region21: #{tpu_custom_call.1} parent=11 // pred_check
          %p289 = pneg %p137
        $region22: #{tpu_custom_call.1} parent=11 // pred_check_branch
          %291 = sbr.rel (%p289) target = $region24
        $region23: #{tpu_custom_call.1} parent=11 // pred_region
          _
        $region24: #{tpu_custom_call.1} parent=11 // pred_fallthru
          _
        // Predicated region
        $region25: #{tpu_custom_call.1} parent=11 // pred_check
          %p292 = pneg %p158
        $region26: #{tpu_custom_call.1} parent=11 // pred_check_branch
          %294 = sbr.rel (%p292) target = $region28
        $region27: #{tpu_custom_call.1} parent=11 // pred_region
          _
        $region28: #{tpu_custom_call.1} parent=11 // pred_fallthru
          _
        // Predicated region
        $region29: #{tpu_custom_call.1} parent=11 // pred_check
          %p295 = pneg %p179
        $region30: #{tpu_custom_call.1} parent=11 // pred_check_branch
          %297 = sbr.rel (%p295) target = $region32
        $region31: #{tpu_custom_call.1} parent=11 // pred_region
          _
        $region32: #{tpu_custom_call.1} parent=11 // pred_fallthru
          _
        // Predicated region
        $region33: #{tpu_custom_call.1} parent=11 // pred_check
          %p298 = pneg %p200
        $region34: #{tpu_custom_call.1} parent=11 // pred_check_branch
          %300 = sbr.rel (%p298) target = $region36
        $region35: #{tpu_custom_call.1} parent=11 // pred_region
          _
        $region36: #{tpu_custom_call.1} parent=11 // pred_fallthru
          _
        // Predicated region
        $region37: #{tpu_custom_call.1} parent=11 // pred_check
          %p301 = pneg %p221
        $region38: #{tpu_custom_call.1} parent=11 // pred_check_branch
          %303 = sbr.rel (%p301) target = $region40
        $region39: #{tpu_custom_call.1} parent=11 // pred_region
          _
        $region40: #{tpu_custom_call.1} parent=11 // pred_fallthru
          _
        // Predicated region
        $region41: #{tpu_custom_call.1} parent=11 // pred_check
          %p304 = pneg %p242
        $region42: #{tpu_custom_call.1} parent=11 // pred_check_branch
          %306 = sbr.rel (%p304) target = $region44
        $region43: #{tpu_custom_call.1} parent=11 // pred_region
          _
        $region44: #{tpu_custom_call.1} parent=11 // pred_fallthru
          _
      $region12: #{tpu_custom_call.1} parent=5 // pred_fallthru
        _
      %p307 = scmp.lt.s32.totalorder %s22, 2
      // Predicated region
      $region45: #{tpu_custom_call.1} parent=5 // pred_check
        %p308 = pneg %p307
      $region46: #{tpu_custom_call.1} parent=5 // pred_check_branch
        %310 = sbr.rel (%p308) target = $region48
      $region47: #{tpu_custom_call.1} parent=5 // pred_region
        // Predicated region
        $region49: #{tpu_custom_call.1} parent=47 // pred_check
          %p311 = pneg %p42
        $region50: #{tpu_custom_call.1} parent=47 // pred_check_branch
          %313 = sbr.rel (%p311) target = $region52
        $region51: #{tpu_custom_call.1} parent=47 // pred_region
          %s314 = sand.u32 %s32, 1
          %s315 = scalar_lea.sflag [#allocation3], %s314
          %s316 = sand.u32 %s32, 1
          %s317 = smul.addr %s316, 128
          %s318 = scalar_lea.vmem [#allocation2], %s317
          %s319 = smul.u32 8, %s22
          %s321 = ssub.s32 2048, 2048
          %322 = vsyncadd %s315, %s321
          %s323 = smul.addr %s319, 4
          %s324 = smul.addr %s323, 64
          %s325 = scalar_lea.hbm %s0, %s324
          %s326 = sshll.u32 %s318, 4
          %s327 = int_to_ptr.vmem [resolvable:$true] %s326
          %332 = dma.hbm_to_vmem [thread:$0]  %s325, 2048, %s327, %s315, 128, 128, 8
        $region52: #{tpu_custom_call.1} parent=47 // pred_fallthru
          _
        // Predicated region
        $region53: #{tpu_custom_call.1} parent=47 // pred_check
          %p333 = pneg %p68
        $region54: #{tpu_custom_call.1} parent=47 // pred_check_branch
          %335 = sbr.rel (%p333) target = $region56
        $region55: #{tpu_custom_call.1} parent=47 // pred_region
          %p336 = scmp.lt.s32.totalorder %s22, 1
          %s337 = scalar_select %p336, %s22, 1
          %s338 = smul.addr %s337, 8
          %s339 = scalar_lea.vmem %s1, %s338
        $region56: #{tpu_custom_call.1} parent=47 // pred_fallthru
          _
      $region48: #{tpu_custom_call.1} parent=5 // pred_fallthru
        _
      %p340 = scmp.le.s32.totalorder 1, %s22
      %p341 = scmp.lt.s32.totalorder %s22, 3
      %p342 = pnand %p340, %p341
      %p343 = pneg %p342
      // Predicated region
      $region57: #{tpu_custom_call.1} parent=5 // pred_check
        _
      $region58: #{tpu_custom_call.1} parent=5 // pred_check_branch
        %345 = sbr.rel (%p342) target = $region60
      $region59: #{tpu_custom_call.1} parent=5 // pred_region
        %s346 = ssub.s32 %s22, 1
        %s347 = sand.u32 %s35, 1
        %s348 = scalar_lea.sflag [#allocation3], %s347
        %s349 = sand.u32 %s35, 1
        %s350 = smul.addr %s349, 128
        %s351 = scalar_lea.vmem [#allocation2], %s350
        // Predicated region
        $region61: #{tpu_custom_call.1} parent=59 // pred_check
          %p352 = pneg %p48
        $region62: #{tpu_custom_call.1} parent=59 // pred_check_branch
          %354 = sbr.rel (%p352) target = $region64
        $region63: #{tpu_custom_call.1} parent=59 // pred_region
          %355 = dma.done %s348, 2048
        $region64: #{tpu_custom_call.1} parent=59 // pred_fallthru
          _
        %s356 = sand.u32 %s35, 1
        %s357 = scalar_lea.sflag [#allocation3], %s356
        %s358 = sand.u32 %s35, 1
        %s359 = smul.addr %s358, 128
        %s360 = scalar_lea.vmem [#allocation2], %s359
        %p361 = pneg %p48
        %p362 = pneg %p45
        %p363 = scmp.lt.s32.totalorder %s27, 1
        %s364 = scalar_select %p363, %s27, 1
        %s365 = smul.addr %s364, 8
        %s366 = scalar_lea.vmem %s1, %s365
        %p367 = pneg %p74
        %p368 = pneg %p71
        %p369 = pneg %p95
        %p370 = pneg %p92
        %p371 = pneg %p116
        %p372 = pneg %p113
        %p373 = pneg %p137
        %p374 = pneg %p134
        %p375 = pneg %p158
        %p376 = pneg %p155
        %p377 = pneg %p179
        %p378 = pneg %p176
        %p379 = pneg %p200
        %p380 = pneg %p197
        %p381 = pneg %p221
        %p382 = pneg %p218
        %p383 = pneg %p242
        %p384 = pneg %p239
        %p385 = pneg %p268
        %p386 = pneg %p265
        %s387 = sand.u32 %s255, 1
        %s388 = scalar_lea.sflag [#allocation4], %s387
        %s389 = sand.u32 %s255, 1
        %s390 = smul.addr %s389, 8
        %s391 = scalar_lea.vmem [#allocation5], %s390
        %s392 = smul.u32 8, %s27
        %p393 = scmp.lt.s32.totalorder %s27, 1
        %s394 = scalar_select %p393, %s27, 1
        %s395 = smul.addr %s394, 8
        %s396 = scalar_lea.vmem %s1, %s395
        %v398 = vld [vmem:[%s9] sm:$0x1]
        %v399 = vld [vmem:[%s9 + $0x1] sm:$0x1]
        %v400 = vld [vmem:[%s9 + $0x2] sm:$0x1]
        %v401 = vld [vmem:[%s9 + $0x3] sm:$0x1]
        %v402 = vld [vmem:[%s9 + $0x4] sm:$0x1]
        %v403 = vld [vmem:[%s351] sm:$0xff]
        %v404 = vld [vmem:[%s351 + $0x8] sm:$0xff]
        %v405 = vld [vmem:[%s351 + $0x10] sm:$0xff]
        %v406 = vld [vmem:[%s351 + $0x18] sm:$0xff]
        %v407 = vld [vmem:[%s351 + $0x20] sm:$0xff]
        %v408 = vld [vmem:[%s351 + $0x28] sm:$0xff]
        %v409 = vld [vmem:[%s351 + $0x30] sm:$0xff]
        %v410 = vld [vmem:[%s351 + $0x38] sm:$0xff]
        %v411 = vld [vmem:[%s351 + $0x40] sm:$0xff]
        %v412 = vld [vmem:[%s351 + $0x48] sm:$0xff]
        %v413 = vld [vmem:[%s351 + $0x50] sm:$0xff]
        %v414 = vld [vmem:[%s351 + $0x58] sm:$0xff]
        %v415 = vld [vmem:[%s351 + $0x60] sm:$0xff]
        %v416 = vld [vmem:[%s351 + $0x68] sm:$0xff]
        %v417 = vld [vmem:[%s351 + $0x70] sm:$0xff]
        %v418 = vld [vmem:[%s351 + $0x78] sm:$0xff]
        %v419 = vld [vmem:[%s2] sm:$0xf]
        %v420 = vld [vmem:[%s2 + $0x4] sm:$0xf]
        %v421 = vld [vmem:[%s2 + $0x8] sm:$0xf]
        %v422 = vld [vmem:[%s2 + $0xc] sm:$0xf]
        %v423 = vld [vmem:[%s2 + $0x10] sm:$0xf]
        %v424 = vld [vmem:[%s2 + $0x14] sm:$0xf]
        %v425 = vld [vmem:[%s2 + $0x18] sm:$0xf]
        %v426 = vld [vmem:[%s2 + $0x1c] sm:$0xf]
        %v427 = vld [vmem:[%s2 + $0x20] sm:$0xf]
        %v428 = vld [vmem:[%s2 + $0x24] sm:$0xf]
        %v429 = vld [vmem:[%s2 + $0x28] sm:$0xf]
        %v430 = vld [vmem:[%s2 + $0x2c] sm:$0xf]
        %v431 = vld [vmem:[%s2 + $0x30] sm:$0xf]
        %v432 = vld [vmem:[%s2 + $0x34] sm:$0xf]
        %v433 = vld [vmem:[%s2 + $0x38] sm:$0xf]
        %v434 = vld [vmem:[%s2 + $0x3c] sm:$0xf]
        %v435 = vld [vmem:[%s2 + $0x40] sm:$0xf]
        %v436 = vld [vmem:[%s2 + $0x44] sm:$0xf]
        %v437 = vld [vmem:[%s2 + $0x48] sm:$0xf]
        %v438 = vld [vmem:[%s2 + $0x4c] sm:$0xf]
        %v439 = vld [vmem:[%s2 + $0x50] sm:$0xf]
        %v440 = vld [vmem:[%s2 + $0x54] sm:$0xf]
        %v441 = vld [vmem:[%s2 + $0x58] sm:$0xf]
        %v442 = vld [vmem:[%s2 + $0x5c] sm:$0xf]
        %v443 = vld [vmem:[%s2 + $0x60] sm:$0xf]
        %v444 = vld [vmem:[%s2 + $0x64] sm:$0xf]
        %v445 = vld [vmem:[%s2 + $0x68] sm:$0xf]
        %v446 = vld [vmem:[%s2 + $0x6c] sm:$0xf]
        %v447 = vlaneseq
        %v448 = vshrl.u32 %v447, 7
        %v449 = vsub.s32 0, %v448
        %v450 = vrot.slane %v398, %v449
        %v467 = vunpack.c.l.b16 %v403
        %v468 = vunpack.c.h.b16 %v403
        %v469 = vunpack.c.l.b16 %v404
        %v470 = vunpack.c.h.b16 %v404
        %v471 = vunpack.c.l.b16 %v405
        %v472 = vunpack.c.h.b16 %v405
        %v473 = vunpack.c.l.b16 %v406
        %v474 = vunpack.c.h.b16 %v406
        %v475 = vunpack.c.l.b16 %v407
        %v476 = vunpack.c.h.b16 %v407
        %v477 = vunpack.c.l.b16 %v408
        %v478 = vunpack.c.h.b16 %v408
        %v479 = vunpack.c.l.b16 %v409
        %v480 = vunpack.c.h.b16 %v409
        %v481 = vunpack.c.l.b16 %v410
        %v482 = vunpack.c.h.b16 %v410
        %v483 = vunpack.c.l.b16 %v411
        %v484 = vunpack.c.h.b16 %v411
        %v485 = vunpack.c.l.b16 %v412
        %v486 = vunpack.c.h.b16 %v412
        %v487 = vunpack.c.l.b16 %v413
        %v488 = vunpack.c.h.b16 %v413
        %v489 = vunpack.c.l.b16 %v414
        %v490 = vunpack.c.h.b16 %v414
        %v491 = vunpack.c.l.b16 %v415
        %v492 = vunpack.c.h.b16 %v415
        %v493 = vunpack.c.l.b16 %v416
        %v494 = vunpack.c.h.b16 %v416
        %v495 = vunpack.c.l.b16 %v417
        %v496 = vunpack.c.h.b16 %v417
        %v497 = vunpack.c.l.b16 %v418
        %v498 = vunpack.c.h.b16 %v418
        %v499 = vpack.c.b16 %v469, %v467
        %v500 = vpack.c.b16 %v470, %v468
        %v501 = vpack.c.b16 %v473, %v471
        %v502 = vpack.c.b16 %v474, %v472
        %v503 = vpack.c.b16 %v477, %v475
        %v504 = vpack.c.b16 %v478, %v476
        %v505 = vpack.c.b16 %v481, %v479
        %v506 = vpack.c.b16 %v482, %v480
        %v507 = vpack.c.b16 %v485, %v483
        %v508 = vpack.c.b16 %v486, %v484
        %v509 = vpack.c.b16 %v489, %v487
        %v510 = vpack.c.b16 %v490, %v488
        %v511 = vpack.c.b16 %v493, %v491
        %v512 = vpack.c.b16 %v494, %v492
        %v513 = vpack.c.b16 %v497, %v495
        %v514 = vpack.c.b16 %v498, %v496
        %v551 = vunpack.c.l.b16 %v419
        %v552 = vunpack.c.l.b16 %v420
        %v553 = vunpack.c.l.b16 %v421
        %v554 = vunpack.c.l.b16 %v422
        %v555 = vunpack.c.l.b16 %v423
        %v556 = vunpack.c.l.b16 %v424
        %v557 = vunpack.c.l.b16 %v425
        %v558 = vunpack.c.l.b16 %v426
        %v559 = vunpack.c.l.b16 %v427
        %v560 = vunpack.c.l.b16 %v428
        %v561 = vunpack.c.l.b16 %v429
        %v562 = vunpack.c.l.b16 %v430
        %v563 = vunpack.c.l.b16 %v431
        %v564 = vunpack.c.l.b16 %v432
        %v565 = vunpack.c.l.b16 %v433
        %v566 = vunpack.c.l.b16 %v434
        %v567 = vunpack.c.l.b16 %v435
        %v568 = vunpack.c.l.b16 %v436
        %v569 = vunpack.c.l.b16 %v437
        %v570 = vunpack.c.l.b16 %v438
        %v571 = vunpack.c.l.b16 %v439
        %v572 = vunpack.c.l.b16 %v440
        %v573 = vunpack.c.l.b16 %v441
        %v574 = vunpack.c.l.b16 %v442
        %v575 = vunpack.c.l.b16 %v443
        %v576 = vunpack.c.l.b16 %v444
        %v577 = vunpack.c.l.b16 %v445
        %v578 = vunpack.c.l.b16 %v446
        %v579 = vpack.c.b16 %v552, %v551
        %v580 = vpack.c.b16 %v554, %v553
        %v581 = vpack.c.b16 %v556, %v555
        %v582 = vpack.c.b16 %v558, %v557
        %v583 = vpack.c.b16 %v560, %v559
        %v584 = vpack.c.b16 %v562, %v561
        %v585 = vpack.c.b16 %v564, %v563
        %v586 = vpack.c.b16 %v566, %v565
        %v587 = vpack.c.b16 %v568, %v567
        %v588 = vpack.c.b16 %v570, %v569
        %v589 = vpack.c.b16 %v572, %v571
        %v590 = vpack.c.b16 %v574, %v573
        %v591 = vpack.c.b16 %v576, %v575
        %v592 = vpack.c.b16 %v578, %v577
        %vm607 = vcmask 785408
        %v609 = vsel %vm607, %v500, 0
        %v612 = vsel %vm607, %v502, 0
        %v615 = vsel %vm607, %v504, 0
        %v618 = vsel %vm607, %v506, 0
        %v621 = vsel %vm607, %v508, 0
        %v624 = vsel %vm607, %v510, 0
        %v627 = vsel %vm607, %v512, 0
        %v630 = vsel %vm607, %v514, 0
        %632 = vmatprep.subr.bf16.mxu0 0
        %633 = vmatpush1.bf16.msra.mxu0 %v586
        %634 = vmatprep.subr.bf16.mxu0 0
        %635 = vmatpush1.bf16.msra.mxu0 %v585
        %636 = vmatprep.subr.bf16.mxu0 0
        %637 = vmatpush1.bf16.msra.mxu0 %v584
        %638 = vmatprep.subr.bf16.mxu0 0
        %639 = vmatpush1.bf16.msra.mxu0 %v583
        %640 = vmatprep.subr.bf16.mxu0 0
        %641 = vmatpush1.bf16.msra.mxu0 %v582
        %642 = vmatprep.subr.bf16.mxu0 0
        %643 = vmatpush1.bf16.msra.mxu0 %v581
        %644 = vmatprep.subr.bf16.mxu0 0
        %645 = vmatpush1.bf16.msra.mxu0 %v580
        %646 = vmatprep.subr.bf16.mxu0 0
        %647 = vmatpush1.bf16.msra.mxu0 %v579
        %648 = vmatprep.subr.bf16.mxu0 0
        %649 = vmatpush2.bf16.msra.mxu0 0
        %650 = vmatprep.subr.bf16.mxu0 0
        %651 = vmatpush2.bf16.msra.mxu0 0
        %652 = vmatprep.subr.bf16.mxu0 0
        %653 = vmatpush2.bf16.msra.mxu0 %v592
        %654 = vmatprep.subr.bf16.mxu0 0
        %655 = vmatpush2.bf16.msra.mxu0 %v591
        %656 = vmatprep.subr.bf16.mxu0 0
        %657 = vmatpush2.bf16.msra.mxu0 %v590
        %658 = vmatprep.subr.bf16.mxu0 0
        %659 = vmatpush2.bf16.msra.mxu0 %v589
        %660 = vmatprep.subr.bf16.mxu0 0
        %661 = vmatpush2.bf16.msra.mxu0 %v588
        %662 = vmatprep.subr.bf16.mxu0 0
        %663 = vmatpush2.bf16.msra.mxu0 %v587
        %664 = vmatprep.mubr.bf16.mxu0 %v609
        %665 = vmatmul.mubr.bf16.gmra.mxu0 %v499
        %v666 = vpop.f32.mrf.mxu0
        %v667 = vadd.f32 %v450, %v666
        %v668 = vpop.f32.mrf.mxu0
        %v669 = vpop.f32.mrf.mxu0
        %v670 = vadd.f32 %v450, %v669
        %v671 = vpop.f32.mrf.mxu0
        %672 = vmatprep.mubr.bf16.mxu0 %v612
        %673 = vmatmul.mubr.bf16.gmra.mxu0 %v501
        %v674 = vpop.f32.mrf.mxu0
        %v675 = vadd.f32 %v450, %v674
        %v676 = vpop.f32.mrf.mxu0
        %v677 = vpop.f32.mrf.mxu0
        %v678 = vadd.f32 %v450, %v677
        %v679 = vpop.f32.mrf.mxu0
        %680 = vmatprep.mubr.bf16.mxu0 %v615
        %681 = vmatmul.mubr.bf16.gmra.mxu0 %v503
        %v682 = vpop.f32.mrf.mxu0
        %v683 = vadd.f32 %v450, %v682
        %v684 = vpop.f32.mrf.mxu0
        %v685 = vpop.f32.mrf.mxu0
        %v686 = vadd.f32 %v450, %v685
        %v687 = vpop.f32.mrf.mxu0
        %688 = vmatprep.mubr.bf16.mxu0 %v618
        %689 = vmatmul.mubr.bf16.gmra.mxu0 %v505
        %v690 = vpop.f32.mrf.mxu0
        %v691 = vadd.f32 %v450, %v690
        %v692 = vpop.f32.mrf.mxu0
        %v693 = vpop.f32.mrf.mxu0
        %v694 = vadd.f32 %v450, %v693
        %v695 = vpop.f32.mrf.mxu0
        %696 = vmatprep.mubr.bf16.mxu0 %v621
        %697 = vmatmul.mubr.bf16.gmra.mxu0 %v507
        %v698 = vpop.f32.mrf.mxu0
        %v699 = vadd.f32 %v450, %v698
        %v700 = vpop.f32.mrf.mxu0
        %v701 = vpop.f32.mrf.mxu0
        %v702 = vadd.f32 %v450, %v701
        %v703 = vpop.f32.mrf.mxu0
        %704 = vmatprep.mubr.bf16.mxu0 %v624
        %705 = vmatmul.mubr.bf16.gmra.mxu0 %v509
        %v706 = vpop.f32.mrf.mxu0
        %v707 = vadd.f32 %v450, %v706
        %v708 = vpop.f32.mrf.mxu0
        %v709 = vpop.f32.mrf.mxu0
        %v710 = vadd.f32 %v450, %v709
        %v711 = vpop.f32.mrf.mxu0
        %712 = vmatprep.mubr.bf16.mxu0 %v627
        %713 = vmatmul.mubr.bf16.gmra.mxu0 %v511
        %v714 = vpop.f32.mrf.mxu0
        %v715 = vadd.f32 %v450, %v714
        %v716 = vpop.f32.mrf.mxu0
        %v717 = vpop.f32.mrf.mxu0
        %v718 = vadd.f32 %v450, %v717
        %v719 = vpop.f32.mrf.mxu0
        %720 = vmatprep.mubr.bf16.mxu0 %v630
        %721 = vmatmul.mubr.bf16.gmra.mxu0 %v513
        %v722 = vpop.f32.mrf.mxu0
        %v723 = vadd.f32 %v450, %v722
        %v724 = vpop.f32.mrf.mxu0
        %v725 = vpop.f32.mrf.mxu0
        %v726 = vadd.f32 %v450, %v725
        %v727 = vpop.f32.mrf.mxu0
        %728 = vdwg.mxu0
        %v729 = vmax.f32 %v667, 0.0
        %v730 = vmax.f32 %v670, 0.0
        %v731 = vmax.f32 %v675, 0.0
        %v732 = vmax.f32 %v678, 0.0
        %v733 = vmax.f32 %v683, 0.0
        %v734 = vmax.f32 %v686, 0.0
        %v735 = vmax.f32 %v691, 0.0
        %v736 = vmax.f32 %v694, 0.0
        %v737 = vmax.f32 %v699, 0.0
        %v738 = vmax.f32 %v702, 0.0
        %v739 = vmax.f32 %v707, 0.0
        %v740 = vmax.f32 %v710, 0.0
        %v741 = vmax.f32 %v715, 0.0
        %v742 = vmax.f32 %v718, 0.0
        %v743 = vmax.f32 %v723, 0.0
        %v744 = vmax.f32 %v726, 0.0
        %v745 = vld [vmem:[%s396] sm:$0xff]
        %v746 = vcvt.f32.s32.to.zero.pseudo %v745
        %v747 = vmax.f32 %v745, 1.0
        %v748 = vlaneseq
        %v749 = vshrl.u32 %v748, 7
        %v750 = vadd.s32 %v749, 8
        %v751 = vcombine.high %v746, %v746
        %v753 = vunpack.c.l.s4 1966171168
        %v754 = vunpack.c.0.s8 %v753
        %v755 = vlaneseq
        %v756 = vshrl.u32 %v755, 7
        %v757 = vsub.s32 %v754, %v756
        %v758 = vrot.slane %v746, %v757
        %v760 = vunpack.c.l.s4 1966171168
        %v761 = vunpack.c.0.s8 %v760
        %v762 = vlaneseq
        %v763 = vshrl.u32 %v762, 7
        %v764 = vsub.s32 %v761, %v763
        %v765 = vrot.slane %v751, %v764
        %v766 = vcombine.high %v758, %v758
        %v767 = vcombine.high %v765, %v765
        %v769 = vunpack.c.l.s4 1966171168
        %v770 = vunpack.c.0.s8 %v769
        %v771 = vlaneseq
        %v772 = vshrl.u32 %v771, 7
        %v773 = vsub.s32 %v770, %v772
        %v774 = vrot.slane %v758, %v773
        %v776 = vunpack.c.l.s4 1966171168
        %v777 = vunpack.c.0.s8 %v776
        %v778 = vlaneseq
        %v779 = vshrl.u32 %v778, 7
        %v780 = vsub.s32 %v777, %v779
        %v781 = vrot.slane %v765, %v780
        %v783 = vunpack.c.l.s4 1966171168
        %v784 = vunpack.c.0.s8 %v783
        %v785 = vlaneseq
        %v786 = vshrl.u32 %v785, 7
        %v787 = vsub.s32 %v784, %v786
        %v788 = vrot.slane %v766, %v787
        %v790 = vunpack.c.l.s4 1966171168
        %v791 = vunpack.c.0.s8 %v790
        %v792 = vlaneseq
        %v793 = vshrl.u32 %v792, 7
        %v794 = vsub.s32 %v791, %v793
        %v795 = vrot.slane %v767, %v794
        %v796 = vcombine.high %v774, %v774
        %v797 = vcombine.high %v781, %v781
        %v798 = vcombine.high %v788, %v788
        %v799 = vcombine.high %v795, %v795
        %v800 = vlaneseq
        %v801 = vshrl.u32 %v800, 7
        %v802 = vsub.s32 0, %v801
        %v803 = vrot.slane %v774, %v802
        %v804 = vlaneseq
        %v805 = vshrl.u32 %v804, 7
        %v806 = vsub.s32 0, %v805
        %v807 = vrot.slane %v788, %v806
        %v808 = vlaneseq
        %v809 = vshrl.u32 %v808, 7
        %v810 = vsub.s32 0, %v809
        %v811 = vrot.slane %v796, %v810
        %v812 = vlaneseq
        %v813 = vshrl.u32 %v812, 7
        %v814 = vsub.s32 0, %v813
        %v815 = vrot.slane %v798, %v814
        %v816 = vlaneseq
        %v817 = vshrl.u32 %v816, 7
        %v818 = vsub.s32 0, %v817
        %v819 = vrot.slane %v781, %v818
        %v820 = vlaneseq
        %v821 = vshrl.u32 %v820, 7
        %v822 = vsub.s32 0, %v821
        %v823 = vrot.slane %v795, %v822
        %v824 = vlaneseq
        %v825 = vshrl.u32 %v824, 7
        %v826 = vsub.s32 0, %v825
        %v827 = vrot.slane %v797, %v826
        %v828 = vlaneseq
        %v829 = vshrl.u32 %v828, 7
        %v830 = vsub.s32 0, %v829
        %v831 = vrot.slane %v799, %v830
        %832 = vset.pattern.permute.xlu0 0
        %833 = vperm.xlu0 %832, %v803
        %v834 = vpop.permute.xlu0 %833
        %835 = vset.pattern.permute.xlu0 0
        %836 = vperm.xlu0 %835, %v807
        %v837 = vpop.permute.xlu0 %836
        %838 = vset.pattern.permute.xlu0 0
        %839 = vperm.xlu0 %838, %v811
        %v840 = vpop.permute.xlu0 %839
        %841 = vset.pattern.permute.xlu0 0
        %842 = vperm.xlu0 %841, %v815
        %v843 = vpop.permute.xlu0 %842
        %844 = vset.pattern.permute.xlu0 0
        %845 = vperm.xlu0 %844, %v819
        %v846 = vpop.permute.xlu0 %845
        %847 = vset.pattern.permute.xlu0 0
        %848 = vperm.xlu0 %847, %v823
        %v849 = vpop.permute.xlu0 %848
        %850 = vset.pattern.permute.xlu0 0
        %851 = vperm.xlu0 %850, %v827
        %v852 = vpop.permute.xlu0 %851
        %853 = vset.pattern.permute.xlu0 0
        %854 = vperm.xlu0 %853, %v831
        %v855 = vpop.permute.xlu0 %854
        %vm856 = vcmp.lt.s32.totalorder %v749, %v834
        %vm857 = vcmp.lt.s32.totalorder %v750, %v834
        %vm858 = vcmp.lt.s32.totalorder %v749, %v837
        %vm859 = vcmp.lt.s32.totalorder %v750, %v837
        %vm860 = vcmp.lt.s32.totalorder %v749, %v840
        %vm861 = vcmp.lt.s32.totalorder %v750, %v840
        %vm862 = vcmp.lt.s32.totalorder %v749, %v843
        %vm863 = vcmp.lt.s32.totalorder %v750, %v843
        %vm864 = vcmp.lt.s32.totalorder %v749, %v846
        %vm865 = vcmp.lt.s32.totalorder %v750, %v846
        %vm866 = vcmp.lt.s32.totalorder %v749, %v849
        %vm867 = vcmp.lt.s32.totalorder %v750, %v849
        %vm868 = vcmp.lt.s32.totalorder %v749, %v852
        %vm869 = vcmp.lt.s32.totalorder %v750, %v852
        %vm870 = vcmp.lt.s32.totalorder %v749, %v855
        %vm871 = vcmp.lt.s32.totalorder %v750, %v855
        %v872 = vsel %vm856, %v729, 0.0
        %v873 = vsel %vm857, %v730, 0.0
        %v874 = vsel %vm858, %v731, 0.0
        %v875 = vsel %vm859, %v732, 0.0
        %v876 = vsel %vm860, %v733, 0.0
        %v877 = vsel %vm861, %v734, 0.0
        %v878 = vsel %vm862, %v735, 0.0
        %v879 = vsel %vm863, %v736, 0.0
        %v880 = vsel %vm864, %v737, 0.0
        %v881 = vsel %vm865, %v738, 0.0
        %v882 = vsel %vm866, %v739, 0.0
        %v883 = vsel %vm867, %v740, 0.0
        %v884 = vsel %vm868, %v741, 0.0
        %v885 = vsel %vm869, %v742, 0.0
        %v886 = vsel %vm870, %v743, 0.0
        %v887 = vsel %vm871, %v744, 0.0
        %vm888 = vcmask 261120
        %v889 = vsel %vm888, %v872, 0.0
        %v890 = vsel %vm888, %v873, 0.0
        %v891 = vadd.f32 %v889, %v890
        %v892 = vrot.slane %v891, 4
        %v893 = vadd.f32 %v891, %v892
        %v894 = vrot.slane %v893, 2
        %v895 = vadd.f32 %v893, %v894
        %v896 = vrot.slane %v895, 1
        %v897 = vadd.f32 %v895, %v896
        %v898 = vsel %vm888, %v874, 0.0
        %v899 = vsel %vm888, %v875, 0.0
        %v900 = vadd.f32 %v898, %v899
        %v901 = vrot.slane %v900, 4
        %v902 = vadd.f32 %v900, %v901
        %v903 = vrot.slane %v902, 2
        %v904 = vadd.f32 %v902, %v903
        %v905 = vrot.slane %v904, 1
        %v906 = vadd.f32 %v904, %v905
        %v907 = vsel %vm888, %v876, 0.0
        %v908 = vsel %vm888, %v877, 0.0
        %v909 = vadd.f32 %v907, %v908
        %v910 = vrot.slane %v909, 4
        %v911 = vadd.f32 %v909, %v910
        %v912 = vrot.slane %v911, 2
        %v913 = vadd.f32 %v911, %v912
        %v914 = vrot.slane %v913, 1
        %v915 = vadd.f32 %v913, %v914
        %v916 = vsel %vm888, %v878, 0.0
        %v917 = vsel %vm888, %v879, 0.0
        %v918 = vadd.f32 %v916, %v917
        %v919 = vrot.slane %v918, 4
        %v920 = vadd.f32 %v918, %v919
        %v921 = vrot.slane %v920, 2
        %v922 = vadd.f32 %v920, %v921
        %v923 = vrot.slane %v922, 1
        %v924 = vadd.f32 %v922, %v923
        %v925 = vsel %vm888, %v880, 0.0
        %v926 = vsel %vm888, %v881, 0.0
        %v927 = vadd.f32 %v925, %v926
        %v928 = vrot.slane %v927, 4
        %v929 = vadd.f32 %v927, %v928
        %v930 = vrot.slane %v929, 2
        %v931 = vadd.f32 %v929, %v930
        %v932 = vrot.slane %v931, 1
        %v933 = vadd.f32 %v931, %v932
        %v934 = vsel %vm888, %v882, 0.0
        %v935 = vsel %vm888, %v883, 0.0
        %v936 = vadd.f32 %v934, %v935
        %v937 = vrot.slane %v936, 4
        %v938 = vadd.f32 %v936, %v937
        %v939 = vrot.slane %v938, 2
        %v940 = vadd.f32 %v938, %v939
        %v941 = vrot.slane %v940, 1
        %v942 = vadd.f32 %v940, %v941
        %v943 = vsel %vm888, %v884, 0.0
        %v944 = vsel %vm888, %v885, 0.0
        %v945 = vadd.f32 %v943, %v944
        %v946 = vrot.slane %v945, 4
        %v947 = vadd.f32 %v945, %v946
        %v948 = vrot.slane %v947, 2
        %v949 = vadd.f32 %v947, %v948
        %v950 = vrot.slane %v949, 1
        %v951 = vadd.f32 %v949, %v950
        %v952 = vsel %vm888, %v886, 0.0
        %v953 = vsel %vm888, %v887, 0.0
        %v954 = vadd.f32 %v952, %v953
        %v955 = vrot.slane %v954, 4
        %v956 = vadd.f32 %v954, %v955
        %v957 = vrot.slane %v956, 2
        %v958 = vadd.f32 %v956, %v957
        %v959 = vrot.slane %v958, 1
        %v960 = vadd.f32 %v958, %v959
        %v961 = vrcp.pop %v747
        %963 = vset.pattern.permute.xlu0 0
        %964 = vperm.xlu0 %963, %v961
        %v965 = vpop.permute.xlu0 %964
        %v966 = vrot.slane %v965, 1
        %v967 = vrot.slane %v965, 2
        %v968 = vrot.slane %v965, 3
        %v969 = vrot.slane %v965, 4
        %v970 = vrot.slane %v965, 5
        %v971 = vrot.slane %v965, 6
        %v972 = vrot.slane %v965, 7
        %v981 = vmul.f32 %v897, %v965
        %v982 = vmul.f32 %v906, %v966
        %v983 = vmul.f32 %v915, %v967
        %v984 = vmul.f32 %v924, %v968
        %v985 = vmul.f32 %v933, %v969
        %v986 = vmul.f32 %v942, %v970
        %v987 = vmul.f32 %v951, %v971
        %v988 = vmul.f32 %v960, %v972
        %v989 = vpack.c.bf16 %v730, %v729
        %v990 = vpack.c.bf16 %v732, %v731
        %v991 = vpack.c.bf16 %v734, %v733
        %v992 = vpack.c.bf16 %v736, %v735
        %v993 = vpack.c.bf16 %v738, %v737
        %v994 = vpack.c.bf16 %v740, %v739
        %v995 = vpack.c.bf16 %v742, %v741
        %v996 = vpack.c.bf16 %v744, %v743
        %v997 = vpack.c.bf16 %v981, %v981
        %v998 = vpack.c.bf16 %v982, %v982
        %v999 = vpack.c.bf16 %v983, %v983
        %v1000 = vpack.c.bf16 %v984, %v984
        %v1001 = vpack.c.bf16 %v985, %v985
        %v1002 = vpack.c.bf16 %v986, %v986
        %v1003 = vpack.c.bf16 %v987, %v987
        %v1004 = vpack.c.bf16 %v988, %v988
        %v1005 = vld [vmem:[%s3] sm:$0xf]
        %v1006 = vld [vmem:[%s3 + $0x4] sm:$0xf]
        %v1007 = vld [vmem:[%s3 + $0x8] sm:$0xf]
        %v1008 = vld [vmem:[%s3 + $0xc] sm:$0xf]
        %v1009 = vlaneseq
        %v1010 = vshrl.u32 %v1009, 7
        %v1011 = vsub.s32 0, %v1010
        %v1012 = vrot.slane %v399, %v1011
        %v1021 = vunpack.c.l.b16 %v997
        %v1022 = vunpack.c.l.b16 %v998
        %v1023 = vunpack.c.l.b16 %v999
        %v1024 = vunpack.c.l.b16 %v1000
        %v1025 = vunpack.c.l.b16 %v1001
        %v1026 = vunpack.c.l.b16 %v1002
        %v1027 = vunpack.c.l.b16 %v1003
        %v1028 = vunpack.c.l.b16 %v1004
        %v1029 = vrot.slane %v1022, 7
        %vm1030 = vcmask 1041409
        %v1031 = vsel %vm1030, %v1029, %v1021
        %v1032 = vrot.slane %v1023, 6
        %vm1033 = vcmask 1042434
        %v1034 = vsel %vm1033, %v1032, %v1031
        %v1035 = vrot.slane %v1024, 5
        %vm1036 = vcmask 1043459
        %v1037 = vsel %vm1036, %v1035, %v1034
        %v1038 = vrot.slane %v1025, 4
        %vm1039 = vcmask 1044484
        %v1040 = vsel %vm1039, %v1038, %v1037
        %v1041 = vrot.slane %v1026, 3
        %vm1042 = vcmask 1045509
        %v1043 = vsel %vm1042, %v1041, %v1040
        %v1044 = vrot.slane %v1027, 2
        %vm1045 = vcmask 1046534
        %v1046 = vsel %vm1045, %v1044, %v1043
        %v1047 = vrot.slane %v1028, 1
        %vm1048 = vcmask 1047559
        %v1049 = vsel %vm1048, %v1047, %v1046
        %v1050 = vpack.c.b16 %v1049, %v1049
        %v1055 = vunpack.c.l.b16 %v1005
        %v1056 = vunpack.c.l.b16 %v1006
        %v1057 = vunpack.c.l.b16 %v1007
        %v1058 = vunpack.c.l.b16 %v1008
        %v1059 = vpack.c.b16 %v1056, %v1055
        %v1060 = vpack.c.b16 %v1058, %v1057
        %v1064 = vsel %vm888, %v1050, 0
        %1066 = vmatprep.subr.bf16.mxu0 0
        %1067 = vmatpush1.bf16.msra.mxu0 0
        %1068 = vmatprep.subr.bf16.mxu0 0
        %1069 = vmatpush1.bf16.msra.mxu0 0
        %1070 = vmatprep.subr.bf16.mxu0 0
        %1071 = vmatpush1.bf16.msra.mxu0 0
        %1072 = vmatprep.subr.bf16.mxu0 0
        %1073 = vmatpush1.bf16.msra.mxu0 0
        %1074 = vmatprep.subr.bf16.mxu0 0
        %1075 = vmatpush1.bf16.msra.mxu0 0
        %1076 = vmatprep.subr.bf16.mxu0 0
        %1077 = vmatpush1.bf16.msra.mxu0 0
        %1078 = vmatprep.subr.bf16.mxu0 0
        %1079 = vmatpush1.bf16.msra.mxu0 %v1060
        %1080 = vmatprep.subr.bf16.mxu0 0
        %1081 = vmatpush1.bf16.msra.mxu0 %v1059
        %1082 = vmatprep.subr.bf16.mxu0 0
        %1083 = vmatpush2.bf16.msra.mxu0 0
        %1084 = vmatprep.subr.bf16.mxu0 0
        %1085 = vmatpush2.bf16.msra.mxu0 0
        %1086 = vmatprep.subr.bf16.mxu0 0
        %1087 = vmatpush2.bf16.msra.mxu0 0
        %1088 = vmatprep.subr.bf16.mxu0 0
        %1089 = vmatpush2.bf16.msra.mxu0 0
        %1090 = vmatprep.subr.bf16.mxu0 0
        %1091 = vmatpush2.bf16.msra.mxu0 0
        %1092 = vmatprep.subr.bf16.mxu0 0
        %1093 = vmatpush2.bf16.msra.mxu0 0
        %1094 = vmatprep.subr.bf16.mxu0 0
        %1095 = vmatpush2.bf16.msra.mxu0 0
        %1096 = vmatprep.subr.bf16.mxu0 0
        %1097 = vmatpush2.bf16.msra.mxu0 0
        %1098 = vmatprep.mubr.bf16.mxu0 0
        %1099 = vmatmul.mubr.bf16.gmra.mxu0 %v1064
        %v1100 = vpop.f32.mrf.mxu0
        %v1101 = vadd.f32 %v1012, %v1100
        %v1102 = vpop.f32.mrf.mxu0
        %v1103 = vpop.f32.mrf.mxu0
        %v1104 = vpop.f32.mrf.mxu0
        %1105 = vdwg.mxu0
        %v1106 = vld [vmem:[%s4] sm:$0xf]
        %v1107 = vld [vmem:[%s4 + $0x4] sm:$0xf]
        %v1108 = vld [vmem:[%s4 + $0x8] sm:$0xf]
        %v1109 = vld [vmem:[%s4 + $0xc] sm:$0xf]
        %v1110 = vlaneseq
        %v1111 = vshrl.u32 %v1110, 7
        %v1112 = vsub.s32 0, %v1111
        %v1113 = vrot.slane %v400, %v1112
        %v1118 = vunpack.c.l.b16 %v1106
        %v1119 = vunpack.c.l.b16 %v1107
        %v1120 = vunpack.c.l.b16 %v1108
        %v1121 = vunpack.c.l.b16 %v1109
        %v1122 = vpack.c.b16 %v1119, %v1118
        %v1123 = vpack.c.b16 %v1121, %v1120
        %v1127 = vsel %vm888, %v989, 0
        %v1130 = vsel %vm888, %v990, 0
        %v1133 = vsel %vm888, %v991, 0
        %v1136 = vsel %vm888, %v992, 0
        %v1139 = vsel %vm888, %v993, 0
        %v1142 = vsel %vm888, %v994, 0
        %v1145 = vsel %vm888, %v995, 0
        %v1148 = vsel %vm888, %v996, 0
        %1150 = vmatprep.subr.bf16.mxu0 0
        %1151 = vmatpush1.bf16.msra.mxu0 0
        %1152 = vmatprep.subr.bf16.mxu0 0
        %1153 = vmatpush1.bf16.msra.mxu0 0
        %1154 = vmatprep.subr.bf16.mxu0 0
        %1155 = vmatpush1.bf16.msra.mxu0 0
        %1156 = vmatprep.subr.bf16.mxu0 0
        %1157 = vmatpush1.bf16.msra.mxu0 0
        %1158 = vmatprep.subr.bf16.mxu0 0
        %1159 = vmatpush1.bf16.msra.mxu0 0
        %1160 = vmatprep.subr.bf16.mxu0 0
        %1161 = vmatpush1.bf16.msra.mxu0 0
        %1162 = vmatprep.subr.bf16.mxu0 0
        %1163 = vmatpush1.bf16.msra.mxu0 %v1123
        %1164 = vmatprep.subr.bf16.mxu0 0
        %1165 = vmatpush1.bf16.msra.mxu0 %v1122
        %1166 = vmatprep.subr.bf16.mxu0 0
        %1167 = vmatpush2.bf16.msra.mxu0 0
        %1168 = vmatprep.subr.bf16.mxu0 0
        %1169 = vmatpush2.bf16.msra.mxu0 0
        %1170 = vmatprep.subr.bf16.mxu0 0
        %1171 = vmatpush2.bf16.msra.mxu0 0
        %1172 = vmatprep.subr.bf16.mxu0 0
        %1173 = vmatpush2.bf16.msra.mxu0 0
        %1174 = vmatprep.subr.bf16.mxu0 0
        %1175 = vmatpush2.bf16.msra.mxu0 0
        %1176 = vmatprep.subr.bf16.mxu0 0
        %1177 = vmatpush2.bf16.msra.mxu0 0
        %1178 = vmatprep.subr.bf16.mxu0 0
        %1179 = vmatpush2.bf16.msra.mxu0 0
        %1180 = vmatprep.subr.bf16.mxu0 0
        %1181 = vmatpush2.bf16.msra.mxu0 0
        %1182 = vmatprep.mubr.bf16.mxu0 0
        %1183 = vmatmul.mubr.bf16.gmra.mxu0 %v1127
        %v1184 = vpop.f32.mrf.mxu0
        %v1185 = vadd.f32 %v1113, %v1184
        %v1186 = vpop.f32.mrf.mxu0
        %v1187 = vpop.f32.mrf.mxu0
        %v1188 = vadd.f32 %v1113, %v1187
        %v1189 = vpop.f32.mrf.mxu0
        %1190 = vmatprep.mubr.bf16.mxu0 0
        %1191 = vmatmul.mubr.bf16.gmra.mxu0 %v1130
        %v1192 = vpop.f32.mrf.mxu0
        %v1193 = vadd.f32 %v1113, %v1192
        %v1194 = vpop.f32.mrf.mxu0
        %v1195 = vpop.f32.mrf.mxu0
        %v1196 = vadd.f32 %v1113, %v1195
        %v1197 = vpop.f32.mrf.mxu0
        %1198 = vmatprep.mubr.bf16.mxu0 0
        %1199 = vmatmul.mubr.bf16.gmra.mxu0 %v1133
        %v1200 = vpop.f32.mrf.mxu0
        %v1201 = vadd.f32 %v1113, %v1200
        %v1202 = vpop.f32.mrf.mxu0
        %v1203 = vpop.f32.mrf.mxu0
        %v1204 = vadd.f32 %v1113, %v1203
        %v1205 = vpop.f32.mrf.mxu0
        %1206 = vmatprep.mubr.bf16.mxu0 0
        %1207 = vmatmul.mubr.bf16.gmra.mxu0 %v1136
        %v1208 = vpop.f32.mrf.mxu0
        %v1209 = vadd.f32 %v1113, %v1208
        %v1210 = vpop.f32.mrf.mxu0
        %v1211 = vpop.f32.mrf.mxu0
        %v1212 = vadd.f32 %v1113, %v1211
        %v1213 = vpop.f32.mrf.mxu0
        %1214 = vmatprep.mubr.bf16.mxu0 0
        %1215 = vmatmul.mubr.bf16.gmra.mxu0 %v1139
        %v1216 = vpop.f32.mrf.mxu0
        %v1217 = vadd.f32 %v1113, %v1216
        %v1218 = vpop.f32.mrf.mxu0
        %v1219 = vpop.f32.mrf.mxu0
        %v1220 = vadd.f32 %v1113, %v1219
        %v1221 = vpop.f32.mrf.mxu0
        %1222 = vmatprep.mubr.bf16.mxu0 0
        %1223 = vmatmul.mubr.bf16.gmra.mxu0 %v1142
        %v1224 = vpop.f32.mrf.mxu0
        %v1225 = vadd.f32 %v1113, %v1224
        %v1226 = vpop.f32.mrf.mxu0
        %v1227 = vpop.f32.mrf.mxu0
        %v1228 = vadd.f32 %v1113, %v1227
        %v1229 = vpop.f32.mrf.mxu0
        %1230 = vmatprep.mubr.bf16.mxu0 0
        %1231 = vmatmul.mubr.bf16.gmra.mxu0 %v1145
        %v1232 = vpop.f32.mrf.mxu0
        %v1233 = vadd.f32 %v1113, %v1232
        %v1234 = vpop.f32.mrf.mxu0
        %v1235 = vpop.f32.mrf.mxu0
        %v1236 = vadd.f32 %v1113, %v1235
        %v1237 = vpop.f32.mrf.mxu0
        %1238 = vmatprep.mubr.bf16.mxu0 0
        %1239 = vmatmul.mubr.bf16.gmra.mxu0 %v1148
        %v1240 = vpop.f32.mrf.mxu0
        %v1241 = vadd.f32 %v1113, %v1240
        %v1242 = vpop.f32.mrf.mxu0
        %v1243 = vpop.f32.mrf.mxu0
        %v1244 = vadd.f32 %v1113, %v1243
        %v1245 = vpop.f32.mrf.mxu0
        %1246 = vdwg.mxu0
        %v1248 = vcombine.high %v1101, %v1101
        %v1250 = vunpack.c.l.s4 1966171168
        %v1251 = vunpack.c.0.s8 %v1250
        %v1252 = vlaneseq
        %v1253 = vshrl.u32 %v1252, 7
        %v1254 = vsub.s32 %v1251, %v1253
        %v1255 = vrot.slane %v1101, %v1254
        %v1257 = vunpack.c.l.s4 1966171168
        %v1258 = vunpack.c.0.s8 %v1257
        %v1259 = vlaneseq
        %v1260 = vshrl.u32 %v1259, 7
        %v1261 = vsub.s32 %v1258, %v1260
        %v1262 = vrot.slane %v1248, %v1261
        %v1263 = vcombine.high %v1255, %v1255
        %v1264 = vcombine.high %v1262, %v1262
        %v1266 = vunpack.c.l.s4 1966171168
        %v1267 = vunpack.c.0.s8 %v1266
        %v1268 = vlaneseq
        %v1269 = vshrl.u32 %v1268, 7
        %v1270 = vsub.s32 %v1267, %v1269
        %v1271 = vrot.slane %v1255, %v1270
        %v1273 = vunpack.c.l.s4 1966171168
        %v1274 = vunpack.c.0.s8 %v1273
        %v1275 = vlaneseq
        %v1276 = vshrl.u32 %v1275, 7
        %v1277 = vsub.s32 %v1274, %v1276
        %v1278 = vrot.slane %v1262, %v1277
        %v1280 = vunpack.c.l.s4 1966171168
        %v1281 = vunpack.c.0.s8 %v1280
        %v1282 = vlaneseq
        %v1283 = vshrl.u32 %v1282, 7
        %v1284 = vsub.s32 %v1281, %v1283
        %v1285 = vrot.slane %v1263, %v1284
        %v1287 = vunpack.c.l.s4 1966171168
        %v1288 = vunpack.c.0.s8 %v1287
        %v1289 = vlaneseq
        %v1290 = vshrl.u32 %v1289, 7
        %v1291 = vsub.s32 %v1288, %v1290
        %v1292 = vrot.slane %v1264, %v1291
        %v1293 = vcombine.high %v1271, %v1271
        %v1294 = vcombine.high %v1278, %v1278
        %v1295 = vcombine.high %v1285, %v1285
        %v1296 = vcombine.high %v1292, %v1292
        %v1297 = vlaneseq
        %v1298 = vshrl.u32 %v1297, 7
        %v1299 = vsub.s32 0, %v1298
        %v1300 = vrot.slane %v1271, %v1299
        %v1301 = vlaneseq
        %v1302 = vshrl.u32 %v1301, 7
        %v1303 = vsub.s32 0, %v1302
        %v1304 = vrot.slane %v1285, %v1303
        %v1305 = vlaneseq
        %v1306 = vshrl.u32 %v1305, 7
        %v1307 = vsub.s32 0, %v1306
        %v1308 = vrot.slane %v1293, %v1307
        %v1309 = vlaneseq
        %v1310 = vshrl.u32 %v1309, 7
        %v1311 = vsub.s32 0, %v1310
        %v1312 = vrot.slane %v1295, %v1311
        %v1313 = vlaneseq
        %v1314 = vshrl.u32 %v1313, 7
        %v1315 = vsub.s32 0, %v1314
        %v1316 = vrot.slane %v1278, %v1315
        %v1317 = vlaneseq
        %v1318 = vshrl.u32 %v1317, 7
        %v1319 = vsub.s32 0, %v1318
        %v1320 = vrot.slane %v1292, %v1319
        %v1321 = vlaneseq
        %v1322 = vshrl.u32 %v1321, 7
        %v1323 = vsub.s32 0, %v1322
        %v1324 = vrot.slane %v1294, %v1323
        %v1325 = vlaneseq
        %v1326 = vshrl.u32 %v1325, 7
        %v1327 = vsub.s32 0, %v1326
        %v1328 = vrot.slane %v1296, %v1327
        %v1337 = vmul.f32 %v1185, %v1300
        %v1338 = vmul.f32 %v1188, %v1300
        %v1339 = vmul.f32 %v1193, %v1304
        %v1340 = vmul.f32 %v1196, %v1304
        %v1341 = vmul.f32 %v1201, %v1308
        %v1342 = vmul.f32 %v1204, %v1308
        %v1343 = vmul.f32 %v1209, %v1312
        %v1344 = vmul.f32 %v1212, %v1312
        %v1345 = vmul.f32 %v1217, %v1316
        %v1346 = vmul.f32 %v1220, %v1316
        %v1347 = vmul.f32 %v1225, %v1320
        %v1348 = vmul.f32 %v1228, %v1320
        %v1349 = vmul.f32 %v1233, %v1324
        %v1350 = vmul.f32 %v1236, %v1324
        %v1351 = vmul.f32 %v1241, %v1328
        %v1352 = vmul.f32 %v1244, %v1328
        %v1353 = vpack.c.bf16 %v1338, %v1337
        %v1354 = vpack.c.bf16 %v1340, %v1339
        %v1355 = vpack.c.bf16 %v1342, %v1341
        %v1356 = vpack.c.bf16 %v1344, %v1343
        %v1357 = vpack.c.bf16 %v1346, %v1345
        %v1358 = vpack.c.bf16 %v1348, %v1347
        %v1359 = vpack.c.bf16 %v1350, %v1349
        %v1360 = vpack.c.bf16 %v1352, %v1351
        %v1361 = vld [vmem:[%s5] sm:$0xf]
        %v1362 = vld [vmem:[%s5 + $0x4] sm:$0xf]
        %v1363 = vld [vmem:[%s5 + $0x8] sm:$0xf]
        %v1364 = vld [vmem:[%s5 + $0xc] sm:$0xf]
        %v1369 = vunpack.c.l.b16 %v1361
        %v1370 = vunpack.c.l.b16 %v1362
        %v1371 = vunpack.c.l.b16 %v1363
        %v1372 = vunpack.c.l.b16 %v1364
        %v1373 = vpack.c.b16 %v1370, %v1369
        %v1374 = vpack.c.b16 %v1372, %v1371
        %v1378 = vsel %vm888, %v1353, 0
        %v1381 = vsel %vm888, %v1354, 0
        %v1384 = vsel %vm888, %v1355, 0
        %v1387 = vsel %vm888, %v1356, 0
        %v1390 = vsel %vm888, %v1357, 0
        %v1393 = vsel %vm888, %v1358, 0
        %v1396 = vsel %vm888, %v1359, 0
        %v1399 = vsel %vm888, %v1360, 0
        %1401 = vmatprep.subr.bf16.mxu0 0
        %1402 = vmatpush1.bf16.msra.mxu0 0
        %1403 = vmatprep.subr.bf16.mxu0 0
        %1404 = vmatpush1.bf16.msra.mxu0 0
        %1405 = vmatprep.subr.bf16.mxu0 0
        %1406 = vmatpush1.bf16.msra.mxu0 0
        %1407 = vmatprep.subr.bf16.mxu0 0
        %1408 = vmatpush1.bf16.msra.mxu0 0
        %1409 = vmatprep.subr.bf16.mxu0 0
        %1410 = vmatpush1.bf16.msra.mxu0 0
        %1411 = vmatprep.subr.bf16.mxu0 0
        %1412 = vmatpush1.bf16.msra.mxu0 0
        %1413 = vmatprep.subr.bf16.mxu0 0
        %1414 = vmatpush1.bf16.msra.mxu0 %v1374
        %1415 = vmatprep.subr.bf16.mxu0 0
        %1416 = vmatpush1.bf16.msra.mxu0 %v1373
        %1417 = vmatprep.subr.bf16.mxu0 0
        %1418 = vmatpush2.bf16.msra.mxu0 0
        %1419 = vmatprep.subr.bf16.mxu0 0
        %1420 = vmatpush2.bf16.msra.mxu0 0
        %1421 = vmatprep.subr.bf16.mxu0 0
        %1422 = vmatpush2.bf16.msra.mxu0 0
        %1423 = vmatprep.subr.bf16.mxu0 0
        %1424 = vmatpush2.bf16.msra.mxu0 0
        %1425 = vmatprep.subr.bf16.mxu0 0
        %1426 = vmatpush2.bf16.msra.mxu0 0
        %1427 = vmatprep.subr.bf16.mxu0 0
        %1428 = vmatpush2.bf16.msra.mxu0 0
        %1429 = vmatprep.subr.bf16.mxu0 0
        %1430 = vmatpush2.bf16.msra.mxu0 0
        %1431 = vmatprep.subr.bf16.mxu0 0
        %1432 = vmatpush2.bf16.msra.mxu0 0
        %1433 = vmatprep.mubr.bf16.mxu0 0
        %1434 = vmatmul.mubr.bf16.gmra.mxu0 %v1378
        %v1435 = vpop.f32.mrf.mxu0
        %v1436 = vadd.f32 0.0, %v1435
        %v1437 = vpop.f32.mrf.mxu0
        %v1438 = vpop.f32.mrf.mxu0
        %v1439 = vadd.f32 0.0, %v1438
        %v1440 = vpop.f32.mrf.mxu0
        %1441 = vmatprep.mubr.bf16.mxu0 0
        %1442 = vmatmul.mubr.bf16.gmra.mxu0 %v1381
        %v1443 = vpop.f32.mrf.mxu0
        %v1444 = vadd.f32 0.0, %v1443
        %v1445 = vpop.f32.mrf.mxu0
        %v1446 = vpop.f32.mrf.mxu0
        %v1447 = vadd.f32 0.0, %v1446
        %v1448 = vpop.f32.mrf.mxu0
        %1449 = vmatprep.mubr.bf16.mxu0 0
        %1450 = vmatmul.mubr.bf16.gmra.mxu0 %v1384
        %v1451 = vpop.f32.mrf.mxu0
        %v1452 = vadd.f32 0.0, %v1451
        %v1453 = vpop.f32.mrf.mxu0
        %v1454 = vpop.f32.mrf.mxu0
        %v1455 = vadd.f32 0.0, %v1454
        %v1456 = vpop.f32.mrf.mxu0
        %1457 = vmatprep.mubr.bf16.mxu0 0
        %1458 = vmatmul.mubr.bf16.gmra.mxu0 %v1387
        %v1459 = vpop.f32.mrf.mxu0
        %v1460 = vadd.f32 0.0, %v1459
        %v1461 = vpop.f32.mrf.mxu0
        %v1462 = vpop.f32.mrf.mxu0
        %v1463 = vadd.f32 0.0, %v1462
        %v1464 = vpop.f32.mrf.mxu0
        %1465 = vmatprep.mubr.bf16.mxu0 0
        %1466 = vmatmul.mubr.bf16.gmra.mxu0 %v1390
        %v1467 = vpop.f32.mrf.mxu0
        %v1468 = vadd.f32 0.0, %v1467
        %v1469 = vpop.f32.mrf.mxu0
        %v1470 = vpop.f32.mrf.mxu0
        %v1471 = vadd.f32 0.0, %v1470
        %v1472 = vpop.f32.mrf.mxu0
        %1473 = vmatprep.mubr.bf16.mxu0 0
        %1474 = vmatmul.mubr.bf16.gmra.mxu0 %v1393
        %v1475 = vpop.f32.mrf.mxu0
        %v1476 = vadd.f32 0.0, %v1475
        %v1477 = vpop.f32.mrf.mxu0
        %v1478 = vpop.f32.mrf.mxu0
        %v1479 = vadd.f32 0.0, %v1478
        %v1480 = vpop.f32.mrf.mxu0
        %1481 = vmatprep.mubr.bf16.mxu0 0
        %1482 = vmatmul.mubr.bf16.gmra.mxu0 %v1396
        %v1483 = vpop.f32.mrf.mxu0
        %v1484 = vadd.f32 0.0, %v1483
        %v1485 = vpop.f32.mrf.mxu0
        %v1486 = vpop.f32.mrf.mxu0
        %v1487 = vadd.f32 0.0, %v1486
        %v1488 = vpop.f32.mrf.mxu0
        %1489 = vmatprep.mubr.bf16.mxu0 0
        %1490 = vmatmul.mubr.bf16.gmra.mxu0 %v1399
        %v1491 = vpop.f32.mrf.mxu0
        %v1492 = vadd.f32 0.0, %v1491
        %v1493 = vpop.f32.mrf.mxu0
        %v1494 = vpop.f32.mrf.mxu0
        %v1495 = vadd.f32 0.0, %v1494
        %v1496 = vpop.f32.mrf.mxu0
        %1497 = vdwg.mxu0
        %v1498 = vsel %vm856, %v1436, -1e+10
        %v1499 = vsel %vm857, %v1439, -1e+10
        %v1500 = vsel %vm858, %v1444, -1e+10
        %v1501 = vsel %vm859, %v1447, -1e+10
        %v1502 = vsel %vm860, %v1452, -1e+10
        %v1503 = vsel %vm861, %v1455, -1e+10
        %v1504 = vsel %vm862, %v1460, -1e+10
        %v1505 = vsel %vm863, %v1463, -1e+10
        %v1506 = vsel %vm864, %v1468, -1e+10
        %v1507 = vsel %vm865, %v1471, -1e+10
        %v1508 = vsel %vm866, %v1476, -1e+10
        %v1509 = vsel %vm867, %v1479, -1e+10
        %v1510 = vsel %vm868, %v1484, -1e+10
        %v1511 = vsel %vm869, %v1487, -1e+10
        %v1512 = vsel %vm870, %v1492, -1e+10
        %v1513 = vsel %vm871, %v1495, -1e+10
        %vm1514 = vcmask 64512
        %v1515 = vsel %vm1514, %v1498, -inf
        %v1516 = vsel %vm1514, %v1499, -inf
        %v1517 = vmax.f32 %v1515, %v1516
        %v1518 = vrot.slane %v1517, 4
        %v1519 = vmax.f32 %v1517, %v1518
        %v1520 = vrot.slane %v1519, 2
        %v1521 = vmax.f32 %v1519, %v1520
        %v1522 = vrot.slane %v1521, 1
        %v1523 = vmax.f32 %v1521, %v1522
        %v1524 = vsel %vm1514, %v1500, -inf
        %v1525 = vsel %vm1514, %v1501, -inf
        %v1526 = vmax.f32 %v1524, %v1525
        %v1527 = vrot.slane %v1526, 4
        %v1528 = vmax.f32 %v1526, %v1527
        %v1529 = vrot.slane %v1528, 2
        %v1530 = vmax.f32 %v1528, %v1529
        %v1531 = vrot.slane %v1530, 1
        %v1532 = vmax.f32 %v1530, %v1531
        %v1533 = vsel %vm1514, %v1502, -inf
        %v1534 = vsel %vm1514, %v1503, -inf
        %v1535 = vmax.f32 %v1533, %v1534
        %v1536 = vrot.slane %v1535, 4
        %v1537 = vmax.f32 %v1535, %v1536
        %v1538 = vrot.slane %v1537, 2
        %v1539 = vmax.f32 %v1537, %v1538
        %v1540 = vrot.slane %v1539, 1
        %v1541 = vmax.f32 %v1539, %v1540
        %v1542 = vsel %vm1514, %v1504, -inf
        %v1543 = vsel %vm1514, %v1505, -inf
        %v1544 = vmax.f32 %v1542, %v1543
        %v1545 = vrot.slane %v1544, 4
        %v1546 = vmax.f32 %v1544, %v1545
        %v1547 = vrot.slane %v1546, 2
        %v1548 = vmax.f32 %v1546, %v1547
        %v1549 = vrot.slane %v1548, 1
        %v1550 = vmax.f32 %v1548, %v1549
        %v1551 = vsel %vm1514, %v1506, -inf
        %v1552 = vsel %vm1514, %v1507, -inf
        %v1553 = vmax.f32 %v1551, %v1552
        %v1554 = vrot.slane %v1553, 4
        %v1555 = vmax.f32 %v1553, %v1554
        %v1556 = vrot.slane %v1555, 2
        %v1557 = vmax.f32 %v1555, %v1556
        %v1558 = vrot.slane %v1557, 1
        %v1559 = vmax.f32 %v1557, %v1558
        %v1560 = vsel %vm1514, %v1508, -inf
        %v1561 = vsel %vm1514, %v1509, -inf
        %v1562 = vmax.f32 %v1560, %v1561
        %v1563 = vrot.slane %v1562, 4
        %v1564 = vmax.f32 %v1562, %v1563
        %v1565 = vrot.slane %v1564, 2
        %v1566 = vmax.f32 %v1564, %v1565
        %v1567 = vrot.slane %v1566, 1
        %v1568 = vmax.f32 %v1566, %v1567
        %v1569 = vsel %vm1514, %v1510, -inf
        %v1570 = vsel %vm1514, %v1511, -inf
        %v1571 = vmax.f32 %v1569, %v1570
        %v1572 = vrot.slane %v1571, 4
        %v1573 = vmax.f32 %v1571, %v1572
        %v1574 = vrot.slane %v1573, 2
        %v1575 = vmax.f32 %v1573, %v1574
        %v1576 = vrot.slane %v1575, 1
        %v1577 = vmax.f32 %v1575, %v1576
        %v1578 = vsel %vm1514, %v1512, -inf
        %v1579 = vsel %vm1514, %v1513, -inf
        %v1580 = vmax.f32 %v1578, %v1579
        %v1581 = vrot.slane %v1580, 4
        %v1582 = vmax.f32 %v1580, %v1581
        %v1583 = vrot.slane %v1582, 2
        %v1584 = vmax.f32 %v1582, %v1583
        %v1585 = vrot.slane %v1584, 1
        %v1586 = vmax.f32 %v1584, %v1585
        %v1587 = vsub.f32 %v1498, %v1523
        %v1588 = vsub.f32 %v1499, %v1523
        %v1589 = vsub.f32 %v1500, %v1532
        %v1590 = vsub.f32 %v1501, %v1532
        %v1591 = vsub.f32 %v1502, %v1541
        %v1592 = vsub.f32 %v1503, %v1541
        %v1593 = vsub.f32 %v1504, %v1550
        %v1594 = vsub.f32 %v1505, %v1550
        %v1595 = vsub.f32 %v1506, %v1559
        %v1596 = vsub.f32 %v1507, %v1559
        %v1597 = vsub.f32 %v1508, %v1568
        %v1598 = vsub.f32 %v1509, %v1568
        %v1599 = vsub.f32 %v1510, %v1577
        %v1600 = vsub.f32 %v1511, %v1577
        %v1601 = vsub.f32 %v1512, %v1586
        %v1602 = vsub.f32 %v1513, %v1586
        %v1603 = vmul.f32 %v1587, 1.442695
        %v1604 = vpow.pop %v1603
        %v1605 = vmul.f32 %v1588, 1.442695
        %v1606 = vpow.pop %v1605
        %v1607 = vmul.f32 %v1589, 1.442695
        %v1608 = vpow.pop %v1607
        %v1609 = vmul.f32 %v1590, 1.442695
        %v1610 = vpow.pop %v1609
        %v1611 = vmul.f32 %v1591, 1.442695
        %v1612 = vpow.pop %v1611
        %v1613 = vmul.f32 %v1592, 1.442695
        %v1614 = vpow.pop %v1613
        %v1615 = vmul.f32 %v1593, 1.442695
        %v1616 = vpow.pop %v1615
        %v1617 = vmul.f32 %v1594, 1.442695
        %v1618 = vpow.pop %v1617
        %v1619 = vmul.f32 %v1595, 1.442695
        %v1620 = vpow.pop %v1619
        %v1621 = vmul.f32 %v1596, 1.442695
        %v1622 = vpow.pop %v1621
        %v1623 = vmul.f32 %v1597, 1.442695
        %v1624 = vpow.pop %v1623
        %v1625 = vmul.f32 %v1598, 1.442695
        %v1626 = vpow.pop %v1625
        %v1627 = vmul.f32 %v1599, 1.442695
        %v1628 = vpow.pop %v1627
        %v1629 = vmul.f32 %v1600, 1.442695
        %v1630 = vpow.pop %v1629
        %v1631 = vmul.f32 %v1601, 1.442695
        %v1632 = vpow.pop %v1631
        %v1633 = vmul.f32 %v1602, 1.442695
        %v1634 = vpow.pop %v1633
        %v1635 = vsel %vm1514, %v1604, 0.0
        %v1636 = vsel %vm1514, %v1606, 0.0
        %v1637 = vadd.f32 %v1635, %v1636
        %v1638 = vrot.slane %v1637, 4
        %v1639 = vadd.f32 %v1637, %v1638
        %v1640 = vrot.slane %v1639, 2
        %v1641 = vadd.f32 %v1639, %v1640
        %v1642 = vrot.slane %v1641, 1
        %v1643 = vadd.f32 %v1641, %v1642
        %v1644 = vsel %vm1514, %v1608, 0.0
        %v1645 = vsel %vm1514, %v1610, 0.0
        %v1646 = vadd.f32 %v1644, %v1645
        %v1647 = vrot.slane %v1646, 4
        %v1648 = vadd.f32 %v1646, %v1647
        %v1649 = vrot.slane %v1648, 2
        %v1650 = vadd.f32 %v1648, %v1649
        %v1651 = vrot.slane %v1650, 1
        %v1652 = vadd.f32 %v1650, %v1651
        %v1653 = vsel %vm1514, %v1612, 0.0
        %v1654 = vsel %vm1514, %v1614, 0.0
        %v1655 = vadd.f32 %v1653, %v1654
        %v1656 = vrot.slane %v1655, 4
        %v1657 = vadd.f32 %v1655, %v1656
        %v1658 = vrot.slane %v1657, 2
        %v1659 = vadd.f32 %v1657, %v1658
        %v1660 = vrot.slane %v1659, 1
        %v1661 = vadd.f32 %v1659, %v1660
        %v1662 = vsel %vm1514, %v1616, 0.0
        %v1663 = vsel %vm1514, %v1618, 0.0
        %v1664 = vadd.f32 %v1662, %v1663
        %v1665 = vrot.slane %v1664, 4
        %v1666 = vadd.f32 %v1664, %v1665
        %v1667 = vrot.slane %v1666, 2
        %v1668 = vadd.f32 %v1666, %v1667
        %v1669 = vrot.slane %v1668, 1
        %v1670 = vadd.f32 %v1668, %v1669
        %v1671 = vsel %vm1514, %v1620, 0.0
        %v1672 = vsel %vm1514, %v1622, 0.0
        %v1673 = vadd.f32 %v1671, %v1672
        %v1674 = vrot.slane %v1673, 4
        %v1675 = vadd.f32 %v1673, %v1674
        %v1676 = vrot.slane %v1675, 2
        %v1677 = vadd.f32 %v1675, %v1676
        %v1678 = vrot.slane %v1677, 1
        %v1679 = vadd.f32 %v1677, %v1678
        %v1680 = vsel %vm1514, %v1624, 0.0
        %v1681 = vsel %vm1514, %v1626, 0.0
        %v1682 = vadd.f32 %v1680, %v1681
        %v1683 = vrot.slane %v1682, 4
        %v1684 = vadd.f32 %v1682, %v1683
        %v1685 = vrot.slane %v1684, 2
        %v1686 = vadd.f32 %v1684, %v1685
        %v1687 = vrot.slane %v1686, 1
        %v1688 = vadd.f32 %v1686, %v1687
        %v1689 = vsel %vm1514, %v1628, 0.0
        %v1690 = vsel %vm1514, %v1630, 0.0
        %v1691 = vadd.f32 %v1689, %v1690
        %v1692 = vrot.slane %v1691, 4
        %v1693 = vadd.f32 %v1691, %v1692
        %v1694 = vrot.slane %v1693, 2
        %v1695 = vadd.f32 %v1693, %v1694
        %v1696 = vrot.slane %v1695, 1
        %v1697 = vadd.f32 %v1695, %v1696
        %v1698 = vsel %vm1514, %v1632, 0.0
        %v1699 = vsel %vm1514, %v1634, 0.0
        %v1700 = vadd.f32 %v1698, %v1699
        %v1701 = vrot.slane %v1700, 4
        %v1702 = vadd.f32 %v1700, %v1701
        %v1703 = vrot.slane %v1702, 2
        %v1704 = vadd.f32 %v1702, %v1703
        %v1705 = vrot.slane %v1704, 1
        %v1706 = vadd.f32 %v1704, %v1705
        %v1707 = vrcp.pop %v1643
        %v1708 = vrcp.pop %v1652
        %v1709 = vrcp.pop %v1661
        %v1710 = vrcp.pop %v1670
        %v1711 = vrcp.pop %v1679
        %v1712 = vrcp.pop %v1688
        %v1713 = vrcp.pop %v1697
        %v1714 = vrcp.pop %v1706
        %v1715 = vmul.f32 %v1604, %v1707
        %v1716 = vmul.f32 %v1606, %v1707
        %v1717 = vmul.f32 %v1608, %v1708
        %v1718 = vmul.f32 %v1610, %v1708
        %v1719 = vmul.f32 %v1612, %v1709
        %v1720 = vmul.f32 %v1614, %v1709
        %v1721 = vmul.f32 %v1616, %v1710
        %v1722 = vmul.f32 %v1618, %v1710
        %v1723 = vmul.f32 %v1620, %v1711
        %v1724 = vmul.f32 %v1622, %v1711
        %v1725 = vmul.f32 %v1624, %v1712
        %v1726 = vmul.f32 %v1626, %v1712
        %v1727 = vmul.f32 %v1628, %v1713
        %v1728 = vmul.f32 %v1630, %v1713
        %v1729 = vmul.f32 %v1632, %v1714
        %v1730 = vmul.f32 %v1634, %v1714
        %v1731 = vpack.c.bf16 %v1716, %v1715
        %v1732 = vpack.c.bf16 %v1718, %v1717
        %v1733 = vpack.c.bf16 %v1720, %v1719
        %v1734 = vpack.c.bf16 %v1722, %v1721
        %v1735 = vpack.c.bf16 %v1724, %v1723
        %v1736 = vpack.c.bf16 %v1726, %v1725
        %v1737 = vpack.c.bf16 %v1728, %v1727
        %v1738 = vpack.c.bf16 %v1730, %v1729
        %v1739 = vld [vmem:[%s6] sm:$0xf]
        %v1741 = vsel %vm1514, %v1731, 0
        %v1744 = vsel %vm1514, %v1732, 0
        %v1747 = vsel %vm1514, %v1733, 0
        %v1750 = vsel %vm1514, %v1734, 0
        %v1753 = vsel %vm1514, %v1735, 0
        %v1756 = vsel %vm1514, %v1736, 0
        %v1759 = vsel %vm1514, %v1737, 0
        %v1762 = vsel %vm1514, %v1738, 0
        %vm1764 = vcmask 1043456
        %v1766 = vsel %vm1764, %v1739, 0
        %1768 = vmatprep.subr.bf16.mxu0 0
        %1769 = vmatpush1.bf16.msra.mxu0 0
        %1770 = vmatprep.subr.bf16.mxu0 0
        %1771 = vmatpush1.bf16.msra.mxu0 0
        %1772 = vmatprep.subr.bf16.mxu0 0
        %1773 = vmatpush1.bf16.msra.mxu0 0
        %1774 = vmatprep.subr.bf16.mxu0 0
        %1775 = vmatpush1.bf16.msra.mxu0 0
        %1776 = vmatprep.subr.bf16.mxu0 0
        %1777 = vmatpush1.bf16.msra.mxu0 0
        %1778 = vmatprep.subr.bf16.mxu0 0
        %1779 = vmatpush1.bf16.msra.mxu0 0
        %1780 = vmatprep.subr.bf16.mxu0 0
        %1781 = vmatpush1.bf16.msra.mxu0 0
        %1782 = vmatprep.subr.bf16.mxu0 0
        %1783 = vmatpush1.bf16.msra.mxu0 %v1766
        %1784 = vmatprep.subr.bf16.mxu0 0
        %1785 = vmatpush2.bf16.msra.mxu0 0
        %1786 = vmatprep.subr.bf16.mxu0 0
        %1787 = vmatpush2.bf16.msra.mxu0 0
        %1788 = vmatprep.subr.bf16.mxu0 0
        %1789 = vmatpush2.bf16.msra.mxu0 0
        %1790 = vmatprep.subr.bf16.mxu0 0
        %1791 = vmatpush2.bf16.msra.mxu0 0
        %1792 = vmatprep.subr.bf16.mxu0 0
        %1793 = vmatpush2.bf16.msra.mxu0 0
        %1794 = vmatprep.subr.bf16.mxu0 0
        %1795 = vmatpush2.bf16.msra.mxu0 0
        %1796 = vmatprep.subr.bf16.mxu0 0
        %1797 = vmatpush2.bf16.msra.mxu0 0
        %1798 = vmatprep.subr.bf16.mxu0 0
        %1799 = vmatpush2.bf16.msra.mxu0 0
        %1800 = vmatprep.mubr.bf16.mxu0 0
        %1801 = vmatmul.mubr.bf16.gmra.mxu0 %v1741
        %v1802 = vpop.f32.mrf.mxu0
        %v1803 = vadd.f32 0.0, %v1802
        %v1804 = vpop.f32.mrf.mxu0
        %v1805 = vpop.f32.mrf.mxu0
        %v1806 = vadd.f32 0.0, %v1805
        %v1807 = vpop.f32.mrf.mxu0
        %1808 = vmatprep.mubr.bf16.mxu0 0
        %1809 = vmatmul.mubr.bf16.gmra.mxu0 %v1744
        %v1810 = vpop.f32.mrf.mxu0
        %v1811 = vadd.f32 0.0, %v1810
        %v1812 = vpop.f32.mrf.mxu0
        %v1813 = vpop.f32.mrf.mxu0
        %v1814 = vadd.f32 0.0, %v1813
        %v1815 = vpop.f32.mrf.mxu0
        %1816 = vmatprep.mubr.bf16.mxu0 0
        %1817 = vmatmul.mubr.bf16.gmra.mxu0 %v1747
        %v1818 = vpop.f32.mrf.mxu0
        %v1819 = vadd.f32 0.0, %v1818
        %v1820 = vpop.f32.mrf.mxu0
        %v1821 = vpop.f32.mrf.mxu0
        %v1822 = vadd.f32 0.0, %v1821
        %v1823 = vpop.f32.mrf.mxu0
        %1824 = vmatprep.mubr.bf16.mxu0 0
        %1825 = vmatmul.mubr.bf16.gmra.mxu0 %v1750
        %v1826 = vpop.f32.mrf.mxu0
        %v1827 = vadd.f32 0.0, %v1826
        %v1828 = vpop.f32.mrf.mxu0
        %v1829 = vpop.f32.mrf.mxu0
        %v1830 = vadd.f32 0.0, %v1829
        %v1831 = vpop.f32.mrf.mxu0
        %1832 = vmatprep.mubr.bf16.mxu0 0
        %1833 = vmatmul.mubr.bf16.gmra.mxu0 %v1753
        %v1834 = vpop.f32.mrf.mxu0
        %v1835 = vadd.f32 0.0, %v1834
        %v1836 = vpop.f32.mrf.mxu0
        %v1837 = vpop.f32.mrf.mxu0
        %v1838 = vadd.f32 0.0, %v1837
        %v1839 = vpop.f32.mrf.mxu0
        %1840 = vmatprep.mubr.bf16.mxu0 0
        %1841 = vmatmul.mubr.bf16.gmra.mxu0 %v1756
        %v1842 = vpop.f32.mrf.mxu0
        %v1843 = vadd.f32 0.0, %v1842
        %v1844 = vpop.f32.mrf.mxu0
        %v1845 = vpop.f32.mrf.mxu0
        %v1846 = vadd.f32 0.0, %v1845
        %v1847 = vpop.f32.mrf.mxu0
        %1848 = vmatprep.mubr.bf16.mxu0 0
        %1849 = vmatmul.mubr.bf16.gmra.mxu0 %v1759
        %v1850 = vpop.f32.mrf.mxu0
        %v1851 = vadd.f32 0.0, %v1850
        %v1852 = vpop.f32.mrf.mxu0
        %v1853 = vpop.f32.mrf.mxu0
        %v1854 = vadd.f32 0.0, %v1853
        %v1855 = vpop.f32.mrf.mxu0
        %1856 = vmatprep.mubr.bf16.mxu0 0
        %1857 = vmatmul.mubr.bf16.gmra.mxu0 %v1762
        %v1858 = vpop.f32.mrf.mxu0
        %v1859 = vadd.f32 0.0, %v1858
        %v1860 = vpop.f32.mrf.mxu0
        %v1861 = vpop.f32.mrf.mxu0
        %v1862 = vadd.f32 0.0, %v1861
        %v1863 = vpop.f32.mrf.mxu0
        %1864 = vdwg.mxu0
        %1881 = vrot.lane.b32.xlu0 %v1185, 96
        %v1882 = vpop.permute.xlu0 %1881
        %1883 = vrot.lane.b32.xlu0 %v1188, 96
        %v1884 = vpop.permute.xlu0 %1883
        %1885 = vrot.lane.b32.xlu0 %v1193, 96
        %v1886 = vpop.permute.xlu0 %1885
        %1887 = vrot.lane.b32.xlu0 %v1196, 96
        %v1888 = vpop.permute.xlu0 %1887
        %1889 = vrot.lane.b32.xlu0 %v1201, 96
        %v1890 = vpop.permute.xlu0 %1889
        %1891 = vrot.lane.b32.xlu0 %v1204, 96
        %v1892 = vpop.permute.xlu0 %1891
        %1893 = vrot.lane.b32.xlu0 %v1209, 96
        %v1894 = vpop.permute.xlu0 %1893
        %1895 = vrot.lane.b32.xlu0 %v1212, 96
        %v1896 = vpop.permute.xlu0 %1895
        %1897 = vrot.lane.b32.xlu0 %v1217, 96
        %v1898 = vpop.permute.xlu0 %1897
        %1899 = vrot.lane.b32.xlu0 %v1220, 96
        %v1900 = vpop.permute.xlu0 %1899
        %1901 = vrot.lane.b32.xlu0 %v1225, 96
        %v1902 = vpop.permute.xlu0 %1901
        %1903 = vrot.lane.b32.xlu0 %v1228, 96
        %v1904 = vpop.permute.xlu0 %1903
        %1905 = vrot.lane.b32.xlu0 %v1233, 96
        %v1906 = vpop.permute.xlu0 %1905
        %1907 = vrot.lane.b32.xlu0 %v1236, 96
        %v1908 = vpop.permute.xlu0 %1907
        %1909 = vrot.lane.b32.xlu0 %v1241, 96
        %v1910 = vpop.permute.xlu0 %1909
        %1911 = vrot.lane.b32.xlu0 %v1244, 96
        %v1912 = vpop.permute.xlu0 %1911
        %v1929 = vmul.f32 %v1803, %v1882
        %v1930 = vmul.f32 %v1806, %v1884
        %v1931 = vmul.f32 %v1811, %v1886
        %v1932 = vmul.f32 %v1814, %v1888
        %v1933 = vmul.f32 %v1819, %v1890
        %v1934 = vmul.f32 %v1822, %v1892
        %v1935 = vmul.f32 %v1827, %v1894
        %v1936 = vmul.f32 %v1830, %v1896
        %v1937 = vmul.f32 %v1835, %v1898
        %v1938 = vmul.f32 %v1838, %v1900
        %v1939 = vmul.f32 %v1843, %v1902
        %v1940 = vmul.f32 %v1846, %v1904
        %v1941 = vmul.f32 %v1851, %v1906
        %v1942 = vmul.f32 %v1854, %v1908
        %v1943 = vmul.f32 %v1859, %v1910
        %v1944 = vmul.f32 %v1862, %v1912
        %v1945 = vsel %vm888, %v1929, 0.0
        %v1946 = vsel %vm888, %v1930, 0.0
        %v1947 = vadd.f32 %v1945, %v1946
        %v1948 = vrot.slane %v1947, 4
        %v1949 = vadd.f32 %v1947, %v1948
        %v1950 = vrot.slane %v1949, 2
        %v1951 = vadd.f32 %v1949, %v1950
        %v1952 = vrot.slane %v1951, 1
        %v1953 = vadd.f32 %v1951, %v1952
        %v1954 = vsel %vm888, %v1931, 0.0
        %v1955 = vsel %vm888, %v1932, 0.0
        %v1956 = vadd.f32 %v1954, %v1955
        %v1957 = vrot.slane %v1956, 4
        %v1958 = vadd.f32 %v1956, %v1957
        %v1959 = vrot.slane %v1958, 2
        %v1960 = vadd.f32 %v1958, %v1959
        %v1961 = vrot.slane %v1960, 1
        %v1962 = vadd.f32 %v1960, %v1961
        %v1963 = vsel %vm888, %v1933, 0.0
        %v1964 = vsel %vm888, %v1934, 0.0
        %v1965 = vadd.f32 %v1963, %v1964
        %v1966 = vrot.slane %v1965, 4
        %v1967 = vadd.f32 %v1965, %v1966
        %v1968 = vrot.slane %v1967, 2
        %v1969 = vadd.f32 %v1967, %v1968
        %v1970 = vrot.slane %v1969, 1
        %v1971 = vadd.f32 %v1969, %v1970
        %v1972 = vsel %vm888, %v1935, 0.0
        %v1973 = vsel %vm888, %v1936, 0.0
        %v1974 = vadd.f32 %v1972, %v1973
        %v1975 = vrot.slane %v1974, 4
        %v1976 = vadd.f32 %v1974, %v1975
        %v1977 = vrot.slane %v1976, 2
        %v1978 = vadd.f32 %v1976, %v1977
        %v1979 = vrot.slane %v1978, 1
        %v1980 = vadd.f32 %v1978, %v1979
        %v1981 = vsel %vm888, %v1937, 0.0
        %v1982 = vsel %vm888, %v1938, 0.0
        %v1983 = vadd.f32 %v1981, %v1982
        %v1984 = vrot.slane %v1983, 4
        %v1985 = vadd.f32 %v1983, %v1984
        %v1986 = vrot.slane %v1985, 2
        %v1987 = vadd.f32 %v1985, %v1986
        %v1988 = vrot.slane %v1987, 1
        %v1989 = vadd.f32 %v1987, %v1988
        %v1990 = vsel %vm888, %v1939, 0.0
        %v1991 = vsel %vm888, %v1940, 0.0
        %v1992 = vadd.f32 %v1990, %v1991
        %v1993 = vrot.slane %v1992, 4
        %v1994 = vadd.f32 %v1992, %v1993
        %v1995 = vrot.slane %v1994, 2
        %v1996 = vadd.f32 %v1994, %v1995
        %v1997 = vrot.slane %v1996, 1
        %v1998 = vadd.f32 %v1996, %v1997
        %v1999 = vsel %vm888, %v1941, 0.0
        %v2000 = vsel %vm888, %v1942, 0.0
        %v2001 = vadd.f32 %v1999, %v2000
        %v2002 = vrot.slane %v2001, 4
        %v2003 = vadd.f32 %v2001, %v2002
        %v2004 = vrot.slane %v2003, 2
        %v2005 = vadd.f32 %v2003, %v2004
        %v2006 = vrot.slane %v2005, 1
        %v2007 = vadd.f32 %v2005, %v2006
        %v2008 = vsel %vm888, %v1943, 0.0
        %v2009 = vsel %vm888, %v1944, 0.0
        %v2010 = vadd.f32 %v2008, %v2009
        %v2011 = vrot.slane %v2010, 4
        %v2012 = vadd.f32 %v2010, %v2011
        %v2013 = vrot.slane %v2012, 2
        %v2014 = vadd.f32 %v2012, %v2013
        %v2015 = vrot.slane %v2014, 1
        %v2016 = vadd.f32 %v2014, %v2015
        %v2017 = vsel %vm888, %v729, -inf
        %v2018 = vsel %vm888, %v730, -inf
        %v2019 = vmax.f32 %v2017, %v2018
        %v2020 = vrot.slane %v2019, 4
        %v2021 = vmax.f32 %v2019, %v2020
        %v2022 = vrot.slane %v2021, 2
        %v2023 = vmax.f32 %v2021, %v2022
        %v2024 = vrot.slane %v2023, 1
        %v2025 = vmax.f32 %v2023, %v2024
        %v2026 = vsel %vm888, %v731, -inf
        %v2027 = vsel %vm888, %v732, -inf
        %v2028 = vmax.f32 %v2026, %v2027
        %v2029 = vrot.slane %v2028, 4
        %v2030 = vmax.f32 %v2028, %v2029
        %v2031 = vrot.slane %v2030, 2
        %v2032 = vmax.f32 %v2030, %v2031
        %v2033 = vrot.slane %v2032, 1
        %v2034 = vmax.f32 %v2032, %v2033
        %v2035 = vsel %vm888, %v733, -inf
        %v2036 = vsel %vm888, %v734, -inf
        %v2037 = vmax.f32 %v2035, %v2036
        %v2038 = vrot.slane %v2037, 4
        %v2039 = vmax.f32 %v2037, %v2038
        %v2040 = vrot.slane %v2039, 2
        %v2041 = vmax.f32 %v2039, %v2040
        %v2042 = vrot.slane %v2041, 1
        %v2043 = vmax.f32 %v2041, %v2042
        %v2044 = vsel %vm888, %v735, -inf
        %v2045 = vsel %vm888, %v736, -inf
        %v2046 = vmax.f32 %v2044, %v2045
        %v2047 = vrot.slane %v2046, 4
        %v2048 = vmax.f32 %v2046, %v2047
        %v2049 = vrot.slane %v2048, 2
        %v2050 = vmax.f32 %v2048, %v2049
        %v2051 = vrot.slane %v2050, 1
        %v2052 = vmax.f32 %v2050, %v2051
        %v2053 = vsel %vm888, %v737, -inf
        %v2054 = vsel %vm888, %v738, -inf
        %v2055 = vmax.f32 %v2053, %v2054
        %v2056 = vrot.slane %v2055, 4
        %v2057 = vmax.f32 %v2055, %v2056
        %v2058 = vrot.slane %v2057, 2
        %v2059 = vmax.f32 %v2057, %v2058
        %v2060 = vrot.slane %v2059, 1
        %v2061 = vmax.f32 %v2059, %v2060
        %v2062 = vsel %vm888, %v739, -inf
        %v2063 = vsel %vm888, %v740, -inf
        %v2064 = vmax.f32 %v2062, %v2063
        %v2065 = vrot.slane %v2064, 4
        %v2066 = vmax.f32 %v2064, %v2065
        %v2067 = vrot.slane %v2066, 2
        %v2068 = vmax.f32 %v2066, %v2067
        %v2069 = vrot.slane %v2068, 1
        %v2070 = vmax.f32 %v2068, %v2069
        %v2071 = vsel %vm888, %v741, -inf
        %v2072 = vsel %vm888, %v742, -inf
        %v2073 = vmax.f32 %v2071, %v2072
        %v2074 = vrot.slane %v2073, 4
        %v2075 = vmax.f32 %v2073, %v2074
        %v2076 = vrot.slane %v2075, 2
        %v2077 = vmax.f32 %v2075, %v2076
        %v2078 = vrot.slane %v2077, 1
        %v2079 = vmax.f32 %v2077, %v2078
        %v2080 = vsel %vm888, %v743, -inf
        %v2081 = vsel %vm888, %v744, -inf
        %v2082 = vmax.f32 %v2080, %v2081
        %v2083 = vrot.slane %v2082, 4
        %v2084 = vmax.f32 %v2082, %v2083
        %v2085 = vrot.slane %v2084, 2
        %v2086 = vmax.f32 %v2084, %v2085
        %v2087 = vrot.slane %v2086, 1
        %v2088 = vmax.f32 %v2086, %v2087
        %v2089 = vpack.c.bf16 %v1953, %v1953
        %v2090 = vpack.c.bf16 %v1962, %v1962
        %v2091 = vpack.c.bf16 %v1971, %v1971
        %v2092 = vpack.c.bf16 %v1980, %v1980
        %v2093 = vpack.c.bf16 %v1989, %v1989
        %v2094 = vpack.c.bf16 %v1998, %v1998
        %v2095 = vpack.c.bf16 %v2007, %v2007
        %v2096 = vpack.c.bf16 %v2016, %v2016
        %v2097 = vld [vmem:[%s7] sm:$0xf]
        %v2098 = vld [vmem:[%s7 + $0x4] sm:$0xf]
        %v2099 = vld [vmem:[%s7 + $0x8] sm:$0xf]
        %v2100 = vld [vmem:[%s7 + $0xc] sm:$0xf]
        %v2101 = vpack.c.bf16 %v2025, %v2025
        %v2102 = vpack.c.bf16 %v2034, %v2034
        %v2103 = vpack.c.bf16 %v2043, %v2043
        %v2104 = vpack.c.bf16 %v2052, %v2052
        %v2105 = vpack.c.bf16 %v2061, %v2061
        %v2106 = vpack.c.bf16 %v2070, %v2070
        %v2107 = vpack.c.bf16 %v2079, %v2079
        %v2108 = vpack.c.bf16 %v2088, %v2088
        %v2109 = vld [vmem:[%s7 + $0x10] sm:$0xf]
        %v2110 = vld [vmem:[%s7 + $0x14] sm:$0xf]
        %v2111 = vld [vmem:[%s7 + $0x18] sm:$0xf]
        %v2112 = vld [vmem:[%s7 + $0x1c] sm:$0xf]
        %v2121 = vunpack.c.l.b16 %v2101
        %v2122 = vunpack.c.l.b16 %v2102
        %v2123 = vunpack.c.l.b16 %v2103
        %v2124 = vunpack.c.l.b16 %v2104
        %v2125 = vunpack.c.l.b16 %v2105
        %v2126 = vunpack.c.l.b16 %v2106
        %v2127 = vunpack.c.l.b16 %v2107
        %v2128 = vunpack.c.l.b16 %v2108
        %v2129 = vsel %vm1030, %v2122, %v2121
        %v2130 = vsel %vm1033, %v2123, %v2129
        %v2131 = vsel %vm1036, %v2124, %v2130
        %v2132 = vsel %vm1039, %v2125, %v2131
        %v2133 = vsel %vm1042, %v2126, %v2132
        %v2134 = vsel %vm1045, %v2127, %v2133
        %v2135 = vsel %vm1048, %v2128, %v2134
        %v2136 = vpack.c.b16 %v2135, %v2135
        %v2141 = vunpack.c.l.b16 %v2109
        %v2142 = vunpack.c.l.b16 %v2110
        %v2143 = vunpack.c.l.b16 %v2111
        %v2144 = vunpack.c.l.b16 %v2112
        %v2145 = vpack.c.b16 %v2142, %v2141
        %v2146 = vpack.c.b16 %v2144, %v2143
        %v2150 = vsel %vm888, %v2136, 0
        %2152 = vmatprep.subr.bf16.mxu0 0
        %2153 = vmatpush1.bf16.msra.mxu0 0
        %2154 = vmatprep.subr.bf16.mxu0 0
        %2155 = vmatpush1.bf16.msra.mxu0 0
        %2156 = vmatprep.subr.bf16.mxu0 0
        %2157 = vmatpush1.bf16.msra.mxu0 0
        %2158 = vmatprep.subr.bf16.mxu0 0
        %2159 = vmatpush1.bf16.msra.mxu0 0
        %2160 = vmatprep.subr.bf16.mxu0 0
        %2161 = vmatpush1.bf16.msra.mxu0 0
        %2162 = vmatprep.subr.bf16.mxu0 0
        %2163 = vmatpush1.bf16.msra.mxu0 0
        %2164 = vmatprep.subr.bf16.mxu0 0
        %2165 = vmatpush1.bf16.msra.mxu0 %v2146
        %2166 = vmatprep.subr.bf16.mxu0 0
        %2167 = vmatpush1.bf16.msra.mxu0 %v2145
        %2168 = vmatprep.subr.bf16.mxu0 0
        %2169 = vmatpush2.bf16.msra.mxu0 0
        %2170 = vmatprep.subr.bf16.mxu0 0
        %2171 = vmatpush2.bf16.msra.mxu0 0
        %2172 = vmatprep.subr.bf16.mxu0 0
        %2173 = vmatpush2.bf16.msra.mxu0 0
        %2174 = vmatprep.subr.bf16.mxu0 0
        %2175 = vmatpush2.bf16.msra.mxu0 0
        %2176 = vmatprep.subr.bf16.mxu0 0
        %2177 = vmatpush2.bf16.msra.mxu0 0
        %2178 = vmatprep.subr.bf16.mxu0 0
        %2179 = vmatpush2.bf16.msra.mxu0 0
        %2180 = vmatprep.subr.bf16.mxu0 0
        %2181 = vmatpush2.bf16.msra.mxu0 0
        %2182 = vmatprep.subr.bf16.mxu0 0
        %2183 = vmatpush2.bf16.msra.mxu0 0
        %2184 = vmatprep.mubr.bf16.mxu0 0
        %2185 = vmatmul.mubr.bf16.gmra.mxu0 %v2150
        %v2186 = vpop.f32.mrf.mxu0
        %v2187 = vadd.f32 0.0, %v2186
        %v2188 = vpop.f32.mrf.mxu0
        %v2189 = vpop.f32.mrf.mxu0
        %v2190 = vpop.f32.mrf.mxu0
        %2191 = vdwg.mxu0
        %v2200 = vunpack.c.l.b16 %v2089
        %v2201 = vunpack.c.l.b16 %v2090
        %v2202 = vunpack.c.l.b16 %v2091
        %v2203 = vunpack.c.l.b16 %v2092
        %v2204 = vunpack.c.l.b16 %v2093
        %v2205 = vunpack.c.l.b16 %v2094
        %v2206 = vunpack.c.l.b16 %v2095
        %v2207 = vunpack.c.l.b16 %v2096
        %v2208 = vsel %vm1030, %v2201, %v2200
        %v2209 = vsel %vm1033, %v2202, %v2208
        %v2210 = vsel %vm1036, %v2203, %v2209
        %v2211 = vsel %vm1039, %v2204, %v2210
        %v2212 = vsel %vm1042, %v2205, %v2211
        %v2213 = vsel %vm1045, %v2206, %v2212
        %v2214 = vsel %vm1048, %v2207, %v2213
        %v2215 = vpack.c.b16 %v2214, %v2214
        %v2220 = vunpack.c.l.b16 %v2097
        %v2221 = vunpack.c.l.b16 %v2098
        %v2222 = vunpack.c.l.b16 %v2099
        %v2223 = vunpack.c.l.b16 %v2100
        %v2224 = vpack.c.b16 %v2221, %v2220
        %v2225 = vpack.c.b16 %v2223, %v2222
        %v2229 = vsel %vm888, %v2215, 0
        %2231 = vmatprep.subr.bf16.mxu0 0
        %2232 = vmatpush1.bf16.msra.mxu0 0
        %2233 = vmatprep.subr.bf16.mxu0 0
        %2234 = vmatpush1.bf16.msra.mxu0 0
        %2235 = vmatprep.subr.bf16.mxu0 0
        %2236 = vmatpush1.bf16.msra.mxu0 0
        %2237 = vmatprep.subr.bf16.mxu0 0
        %2238 = vmatpush1.bf16.msra.mxu0 0
        %2239 = vmatprep.subr.bf16.mxu0 0
        %2240 = vmatpush1.bf16.msra.mxu0 0
        %2241 = vmatprep.subr.bf16.mxu0 0
        %2242 = vmatpush1.bf16.msra.mxu0 0
        %2243 = vmatprep.subr.bf16.mxu0 0
        %2244 = vmatpush1.bf16.msra.mxu0 %v2225
        %2245 = vmatprep.subr.bf16.mxu0 0
        %2246 = vmatpush1.bf16.msra.mxu0 %v2224
        %2247 = vmatprep.subr.bf16.mxu0 0
        %2248 = vmatpush2.bf16.msra.mxu0 0
        %2249 = vmatprep.subr.bf16.mxu0 0
        %2250 = vmatpush2.bf16.msra.mxu0 0
        %2251 = vmatprep.subr.bf16.mxu0 0
        %2252 = vmatpush2.bf16.msra.mxu0 0
        %2253 = vmatprep.subr.bf16.mxu0 0
        %2254 = vmatpush2.bf16.msra.mxu0 0
        %2255 = vmatprep.subr.bf16.mxu0 0
        %2256 = vmatpush2.bf16.msra.mxu0 0
        %2257 = vmatprep.subr.bf16.mxu0 0
        %2258 = vmatpush2.bf16.msra.mxu0 0
        %2259 = vmatprep.subr.bf16.mxu0 0
        %2260 = vmatpush2.bf16.msra.mxu0 0
        %2261 = vmatprep.subr.bf16.mxu0 0
        %2262 = vmatpush2.bf16.msra.mxu0 0
        %2263 = vmatprep.mubr.bf16.mxu0 0
        %2264 = vmatmul.mubr.bf16.gmra.mxu0 %v2229
        %v2265 = vpop.f32.mrf.mxu0
        %v2266 = vadd.f32 %v2187, %v2265
        %v2267 = vpop.f32.mrf.mxu0
        %v2268 = vpop.f32.mrf.mxu0
        %v2269 = vpop.f32.mrf.mxu0
        %2270 = vdwg.mxu0
        %v2271 = vlaneseq
        %v2272 = vshrl.u32 %v2271, 7
        %v2273 = vsub.s32 0, %v2272
        %v2274 = vrot.slane %v401, %v2273
        %v2275 = vadd.f32 %v2266, %v2274
        %v2276 = vmax.f32 %v2275, 0.0
        %v2277 = vpack.c.bf16 %v2276, %v2276
        %v2278 = vld [vmem:[%s8] sm:$0xf]
        %v2279 = vld [vmem:[%s8 + $0x4] sm:$0xf]
        %v2280 = vld [vmem:[%s8 + $0x8] sm:$0xf]
        %v2281 = vld [vmem:[%s8 + $0xc] sm:$0xf]
        %v2282 = vlaneseq
        %v2283 = vshrl.u32 %v2282, 7
        %v2284 = vsub.s32 0, %v2283
        %v2285 = vrot.slane %v402, %v2284
        %v2290 = vunpack.c.l.b16 %v2278
        %v2291 = vunpack.c.l.b16 %v2279
        %v2292 = vunpack.c.l.b16 %v2280
        %v2293 = vunpack.c.l.b16 %v2281
        %v2294 = vpack.c.b16 %v2291, %v2290
        %v2295 = vpack.c.b16 %v2293, %v2292
        %v2299 = vsel %vm888, %v2277, 0
        %2301 = vmatprep.subr.bf16.mxu0 0
        %2302 = vmatpush1.bf16.msra.mxu0 0
        %2303 = vmatprep.subr.bf16.mxu0 0
        %2304 = vmatpush1.bf16.msra.mxu0 0
        %2305 = vmatprep.subr.bf16.mxu0 0
        %2306 = vmatpush1.bf16.msra.mxu0 0
        %2307 = vmatprep.subr.bf16.mxu0 0
        %2308 = vmatpush1.bf16.msra.mxu0 0
        %2309 = vmatprep.subr.bf16.mxu0 0
        %2310 = vmatpush1.bf16.msra.mxu0 0
        %2311 = vmatprep.subr.bf16.mxu0 0
        %2312 = vmatpush1.bf16.msra.mxu0 0
        %2313 = vmatprep.subr.bf16.mxu0 0
        %2314 = vmatpush1.bf16.msra.mxu0 %v2295
        %2315 = vmatprep.subr.bf16.mxu0 0
        %2316 = vmatpush1.bf16.msra.mxu0 %v2294
        %2317 = vmatprep.subr.bf16.mxu0 0
        %2318 = vmatpush2.bf16.msra.mxu0 0
        %2319 = vmatprep.subr.bf16.mxu0 0
        %2320 = vmatpush2.bf16.msra.mxu0 0
        %2321 = vmatprep.subr.bf16.mxu0 0
        %2322 = vmatpush2.bf16.msra.mxu0 0
        %2323 = vmatprep.subr.bf16.mxu0 0
        %2324 = vmatpush2.bf16.msra.mxu0 0
        %2325 = vmatprep.subr.bf16.mxu0 0
        %2326 = vmatpush2.bf16.msra.mxu0 0
        %2327 = vmatprep.subr.bf16.mxu0 0
        %2328 = vmatpush2.bf16.msra.mxu0 0
        %2329 = vmatprep.subr.bf16.mxu0 0
        %2330 = vmatpush2.bf16.msra.mxu0 0
        %2331 = vmatprep.subr.bf16.mxu0 0
        %2332 = vmatpush2.bf16.msra.mxu0 0
        %2333 = vmatprep.mubr.bf16.mxu0 0
        %2334 = vmatmul.mubr.bf16.gmra.mxu0 %v2299
        %v2335 = vpop.f32.mrf.mxu0
        %v2336 = vadd.f32 %v2285, %v2335
        %v2337 = vpop.f32.mrf.mxu0
        %v2338 = vpop.f32.mrf.mxu0
        %v2339 = vpop.f32.mrf.mxu0
        %2340 = vdwg.mxu0
        %2341 = vst [vmem:[%s391] sm:$0xff] %v2336
        %s2342 = sand.u32 %s255, 1
        %s2343 = scalar_lea.sflag [#allocation4], %s2342
        %s2344 = sand.u32 %s255, 1
        %s2345 = smul.addr %s2344, 8
        %s2346 = scalar_lea.vmem [#allocation5], %s2345
        // Predicated region
        $region65: #{tpu_custom_call.1} parent=59 // pred_check
          %p2347 = pneg %p265
        $region66: #{tpu_custom_call.1} parent=59 // pred_check_branch
          %2349 = sbr.rel (%p2347) target = $region68
        $region67: #{tpu_custom_call.1} parent=59 // pred_region
          %s2351 = ssub.s32 128, 128
          %2352 = vsyncadd %s2343, %s2351
          %s2353 = smul.addr %s27, 128
          %s2354 = scalar_lea.hbm %s10, %s2353
          %s2356 = sshll.u32 %s2346, 4
          %s2357 = int_to_ptr.vmem [resolvable:$true] %s2356
          %2359 = dma.vmem_to_hbm [thread:$0]  %s2357, 128, %s2354, %s2343
        $region68: #{tpu_custom_call.1} parent=59 // pred_fallthru
          _
      $region60: #{tpu_custom_call.1} parent=5 // pred_fallthru
        _
      %p2360 = scmp.le.s32.totalorder 2, %s22
      // Predicated region
      $region69: #{tpu_custom_call.1} parent=5 // pred_check
        %p2361 = pneg %p2360
      $region70: #{tpu_custom_call.1} parent=5 // pred_check_branch
        %2363 = sbr.rel (%p2361) target = $region72
      $region71: #{tpu_custom_call.1} parent=5 // pred_region
        %s2364 = ssub.s32 %s22, 2
        // Predicated region
        $region73: #{tpu_custom_call.1} parent=71 // pred_check
          %p2365 = pneg %p271
        $region74: #{tpu_custom_call.1} parent=71 // pred_check_branch
          %2367 = sbr.rel (%p2365) target = $region76
        $region75: #{tpu_custom_call.1} parent=71 // pred_region
          %s2368 = sand.u32 %s256, 1
          %s2369 = scalar_lea.sflag [#allocation4], %s2368
          %s2370 = sand.u32 %s256, 1
          %s2371 = smul.addr %s2370, 8
          %s2372 = scalar_lea.vmem [#allocation5], %s2371
          %2373 = dma.done %s2369, 128
        $region76: #{tpu_custom_call.1} parent=71 // pred_fallthru
          _
      $region72: #{tpu_custom_call.1} parent=5 // pred_fallthru
        _
    $region6: #{tpu_custom_call.1} parent=1 // loop_footer
      %s26 = sadd.s32 1, %s22
    $region7: #{tpu_custom_call.1} parent=1 // loop_footer_branch
      %21 = sbr.rel target = $region3
    $region8: #{tpu_custom_call.1} parent=1 // loop_exit
      _
    %2374 = vsyncpa [#allocation3], 1
    %s2375 = scalar_lea.sflag [#allocation3], 1
    %2376 = vsyncpa %s2375, 1
    %2377 = vsyncpa [#allocation4], 1
    %s2378 = scalar_lea.sflag [#allocation4], 1
    %2379 = vsyncpa %s2378, 1

</llo_original>
